<compile_context>
chip_gen: v5e
topology: v5e:2x2
jax: 0.10.0
libtpu: 0.0.40
codegen_flags: <defaults>
</compile_context>

<pallas_src>
import jax
import jax.numpy as jnp
from jax.experimental import pallas as pl
from jax.experimental.pallas import tpu as pltpu

HIDDEN = 64
CONV_CH = 32
KSIZE = 3
NCLASS = 2
OUT_LANES = 128   # lane-dense output width (fc padded to a full vreg)


def cnn_lstm_kernel(xw_ref,      # (L*Bp, K)    im2col'd input windows
                    wx_ref,      # (K, 4H)      conv folded into W_ih
                    bx_ref,      # (1, 4H)      conv_b@W_ih^T + b_ih + b_hh
                    whhw_ref,    # (2H, 4H)     [zeros; W_hh^T]
                    fcww_ref,    # (2H, 128)    [zeros; fc_w^T | zero pad]
                    fcb_ref,     # (1, 128)     fc bias, zero padded
                    out_ref,     # (Bp, 128)
                    xproj_ref):  # VMEM scratch (L*Bp, 4H)
    H = HIDDEN
    Bp = out_ref.shape[0]
    LB = xw_ref.shape[0]
    L = LB // Bp

    # --- Hoisted input projection: conv + W_ih + biases in ONE matmul. ---
    xproj_ref[...] = (
        jnp.dot(xw_ref[...], wx_ref[...], preferred_element_type=jnp.float32)
        + bx_ref[...])

    # Lane mask (hoisted): True for lanes 0..H-1 of a 2H-wide vreg.
    lane = jax.lax.broadcasted_iota(jnp.int32, (Bp, 2 * H), dimension=1)
    mask_lo = lane < H

    def step(t, carry):
        # hw: (Bp, 2H), h in lanes H..2H-1 (low lanes junk, masked by the
        #     zero rows of whhw/fcww).
        # cw: (Bp, 2H), c duplicated in both halves.
        hw, cw = carry
        row = pl.multiple_of(t * Bp, Bp)
        xp = xproj_ref[pl.ds(row, Bp), :]                         # (Bp, 4H)
        gates = xp + jnp.dot(hw, whhw_ref[...],
                             preferred_element_type=jnp.float32)   # (Bp, 4H)
        # PyTorch gate order [i|f|g|o]; both slices are vreg-aligned (0, 2H).
        g0 = gates[:, :2 * H]                                       # [a_i|a_f]
        g1 = gates[:, 2 * H:]                                       # [a_g|a_o]
        s0 = jax.nn.sigmoid(g0)                                     # [i |f ]
        # Fused transcendental: tanh(x) = 2*sigmoid(2x) - 1 -> one EUP push
        # instead of separate tanh+sigmoid.
        z = jnp.where(mask_lo, 2.0 * g1, g1)
        sz = jax.nn.sigmoid(z)
        a1 = jnp.where(mask_lo, 2.0 * sz - 1.0, sz)                 # [gt|o ]
        x_op = jnp.where(mask_lo, a1, cw)                           # [gt|c ]
        m = s0 * x_op                                               # [i*gt|f*c]
        cw_new = m + pltpu.roll(m, shift=H, axis=1)                 # [c'|c']
        hw_new = a1 * jnp.tanh(cw_new)                              # [*|o*tanh(c')]
        return hw_new, cw_new

    hw0 = jnp.zeros((Bp, 2 * H), jnp.float32)
    cw0 = jnp.zeros((Bp, 2 * H), jnp.float32)
    hw_last, _ = jax.lax.fori_loop(0, L, step, (hw0, cw0), unroll=True)

    # x = x[:, -1, :]; x = fc(x)  (zero rows of fcww mask the junk low lanes;
    # lane-dense 128-wide store, real logits live in lanes 0..1).
    out_ref[...] = (jnp.dot(hw_last, fcww_ref[...],
                            preferred_element_type=jnp.float32)
                    + fcb_ref[...])


def fold_params(params):
    """One-time parameter folding (call once, reuse across forward calls)."""
    H = HIDDEN
    convw_t = jnp.transpose(params["conv_w"][:, 0, :])            # (K, 32)
    wih_t = jnp.transpose(params["w_ih"])                         # (32, 4H)
    wx = (convw_t @ wih_t).astype(jnp.float32)                    # (K, 4H)
    bx = (params["conv_b"] @ wih_t
          + params["b_ih"] + params["b_hh"])[None, :].astype(jnp.float32)
    whh_wide = jnp.concatenate(
        [jnp.zeros((H, 4 * H), jnp.float32), jnp.transpose(params["w_hh"])],
        axis=0).astype(jnp.float32)                               # (2H, 4H)
    fcw_pad = jnp.pad(jnp.transpose(params["fc_w"]),
                      ((0, 0), (0, OUT_LANES - NCLASS)))          # (H, 128)
    fcw_wide = jnp.concatenate(
        [jnp.zeros((H, OUT_LANES), jnp.float32), fcw_pad],
        axis=0).astype(jnp.float32)                               # (2H, 128)
    fcb = jnp.pad(params["fc_b"],
                  (0, OUT_LANES - NCLASS))[None, :].astype(jnp.float32)
    return dict(wx=wx, bx=bx, whh_wide=whh_wide,
                fcw_wide=fcw_wide, fcb=fcb)


@jax.jit
def cnn_lstm_forward(x, folded):
    """x: (B, 1, L) float32 (PyTorch NCL conv input). `folded` from fold_params."""
    B, _, L = x.shape
    Bp = max(8, ((B + 7) // 8) * 8)                   # pad batch to sublane tile

    xs = x[:, 0, :].astype(jnp.float32)               # (B, L)
    xs = jnp.pad(xs, ((0, Bp - B), (0, 0)))           # (Bp, L)
    xpt = jnp.pad(xs, ((0, 0), (1, 1))).T             # (L+2, Bp)
    # im2col via three static slices (no gather): xw[t, b, k] = x_pad[b, t+k]
    xw = jnp.stack([xpt[0:L], xpt[1:L + 1], xpt[2:L + 2]], axis=-1)  # (L,Bp,K)
    xw2d = xw.reshape(L * Bp, KSIZE)                                 # (L*Bp,K)

    out = pl.pallas_call(
        cnn_lstm_kernel,
        out_shape=jax.ShapeDtypeStruct((Bp, OUT_LANES), jnp.float32),
        grid=(1,),
        in_specs=[
            pl.BlockSpec((L * Bp, KSIZE), lambda i: (0, 0)),
            pl.BlockSpec((KSIZE, 4 * HIDDEN), lambda i: (0, 0)),
            pl.BlockSpec((1, 4 * HIDDEN), lambda i: (0, 0)),
            pl.BlockSpec((2 * HIDDEN, 4 * HIDDEN), lambda i: (0, 0)),
            pl.BlockSpec((2 * HIDDEN, OUT_LANES), lambda i: (0, 0)),
            pl.BlockSpec((1, OUT_LANES), lambda i: (0, 0)),
        ],
        out_specs=pl.BlockSpec((Bp, OUT_LANES), lambda i: (0, 0)),
        scratch_shapes=[pltpu.VMEM((L * Bp, 4 * HIDDEN), jnp.float32)],
        compiler_params=pltpu.CompilerParams(
            dimension_semantics=("arbitrary",)),
    )(xw2d, folded["wx"], folded["bx"], folded["whh_wide"],
      folded["fcw_wide"], folded["fcb"])
    return out[:B, :NCLASS]


def reference_forward(x, params):
    """Pure-JAX reference matching the PyTorch forward semantics."""
    B, _, L = x.shape
    xs = x[:, 0, :]
    x_pad = jnp.pad(xs, ((0, 0), (1, 1)))
    conv_w = params["conv_w"][:, 0, :]                            # (32, 3)
    conv = jnp.stack(
        [x_pad[:, t:t + KSIZE] @ conv_w.T + params["conv_b"] for t in range(L)],
        axis=1)                                                   # (B, L, 32)
    H = HIDDEN
    w_ih, w_hh = params["w_ih"], params["w_hh"]
    bias = params["b_ih"] + params["b_hh"]
    h = jnp.zeros((B, H), jnp.float32)
    c = jnp.zeros((B, H), jnp.float32)
    for t in range(L):
        gates = conv[:, t, :] @ w_ih.T + h @ w_hh.T + bias
        i = jax.nn.sigmoid(gates[:, :H])
        f = jax.nn.sigmoid(gates[:, H:2 * H])
        g = jnp.tanh(gates[:, 2 * H:3 * H])
        o = jax.nn.sigmoid(gates[:, 3 * H:])
        c = f * c + i * g
        h = o * jnp.tanh(c)
    return h @ params["fc_w"].T + params["fc_b"]


if __name__ == "__main__":
    key = jax.random.PRNGKey(0)
    B, L = 2, 16
    ks = jax.random.split(key, 9)

    def u(k, shape, scale):
        return jax.random.uniform(k, shape, jnp.float32, -scale, scale)

    params = dict(
        conv_w=u(ks[0], (CONV_CH, 1, KSIZE), 0.5),
        conv_b=u(ks[1], (CONV_CH,), 0.5),
        w_ih=u(ks[2], (4 * HIDDEN, CONV_CH), 0.125),
        w_hh=u(ks[3], (4 * HIDDEN, HIDDEN), 0.125),
        b_ih=u(ks[4], (4 * HIDDEN,), 0.125),
        b_hh=u(ks[5], (4 * HIDDEN,), 0.125),
        fc_w=u(ks[6], (NCLASS, HIDDEN), 0.125),
        fc_b=u(ks[7], (NCLASS,), 0.125),
    )
    x = jax.random.normal(ks[8], (B, 1, L), jnp.float32)

    folded = jax.tree_util.tree_map(jax.block_until_ready,
                                    fold_params(params))  # one-time folding
    out = jax.block_until_ready(cnn_lstm_forward(x, folded))
    ref = reference_forward(x, params)

    assert out.shape == (B, NCLASS), out.shape
    if not jnp.allclose(out, ref, atol=1e-4, rtol=1e-4):
        raise AssertionError(f"mismatch: {out} vs {ref}")
    print("KERNEL_OK")
</pallas_src>

<mosaic_0001>
module attributes {stable_mosaic.version = 11 : i64} {
  func.func @cnn_lstm_kernel(%arg0: i32, %arg1: memref<128x3xf32, #tpu.memory_space<vmem>>, %arg2: memref<3x256xf32, #tpu.memory_space<vmem>>, %arg3: memref<1x256xf32, #tpu.memory_space<vmem>>, %arg4: memref<128x256xf32, #tpu.memory_space<vmem>>, %arg5: memref<128x128xf32, #tpu.memory_space<vmem>>, %arg6: memref<1x128xf32, #tpu.memory_space<vmem>>, %arg7: memref<8x128xf32, #tpu.memory_space<vmem>>, %arg8: memref<128x256xf32, #tpu.memory_space<vmem>>) attributes {dimension_semantics = [#tpu.dimension_semantics<arbitrary>], iteration_bounds = array<i64: 1>, scalar_prefetch = 0 : i64, scratch_operands = 1 : i64, tpu.core_type = #tpu.core_type<tc>, window_params = [{pipeline_mode = #tpu.pipeline_mode<synchronous>, transform_indices = @transform_0, window_bounds = array<i64: 128, 3>}, {pipeline_mode = #tpu.pipeline_mode<synchronous>, transform_indices = @transform_1, window_bounds = array<i64: 3, 256>}, {pipeline_mode = #tpu.pipeline_mode<synchronous>, transform_indices = @transform_2, window_bounds = array<i64: 1, 256>}, {pipeline_mode = #tpu.pipeline_mode<synchronous>, transform_indices = @transform_3, window_bounds = array<i64: 128, 256>}, {pipeline_mode = #tpu.pipeline_mode<synchronous>, transform_indices = @transform_4, window_bounds = array<i64: 128, 128>}, {pipeline_mode = #tpu.pipeline_mode<synchronous>, transform_indices = @transform_5, window_bounds = array<i64: 1, 128>}, {pipeline_mode = #tpu.pipeline_mode<synchronous>, transform_indices = @transform_6, window_bounds = array<i64: 8, 128>}]} {
    %c0 = arith.constant 0 : index
    %c0_0 = arith.constant 0 : index
    %0 = vector.load %arg1[%c0, %c0_0] : memref<128x3xf32, #tpu.memory_space<vmem>>, vector<128x3xf32>
    %c0_1 = arith.constant 0 : index
    %c0_2 = arith.constant 0 : index
    %1 = vector.load %arg2[%c0_1, %c0_2] : memref<3x256xf32, #tpu.memory_space<vmem>>, vector<3x256xf32>
    %cst = arith.constant dense<0.000000e+00> : vector<128x256xf32>
    %2 = tpu.matmul %0, %1, %cst {dimension_numbers = #tpu.dot_dimension_numbers<[1], [0], [0], [1], [0, 0, 1, 1], [], []>} : vector<128x3xf32>, vector<3x256xf32>, vector<128x256xf32> -> vector<128x256xf32>
    %c0_3 = arith.constant 0 : index
    %c0_4 = arith.constant 0 : index
    %3 = vector.load %arg3[%c0_3, %c0_4] : memref<1x256xf32, #tpu.memory_space<vmem>>, vector<1x256xf32>
    %4 = vector.broadcast %3 : vector<1x256xf32> to vector<128x256xf32>
    %5 = arith.addf %2, %4 : vector<128x256xf32>
    %c0_5 = arith.constant 0 : index
    %c0_6 = arith.constant 0 : index
    %6 = vector.load %arg8[%c0_5, %c0_6] : memref<128x256xf32, #tpu.memory_space<vmem>>, vector<128x256xf32>
    tpu.vector_store %arg8[%c0_5, %c0_6], %5 {strides = array<i32>} : memref<128x256xf32, #tpu.memory_space<vmem>>, vector<128x256xf32>,
    %7 = tpu.iota {dimensions = array<i32: 1>} : vector<8x128xi32>
    %c64_i32 = arith.constant 64 : i32
    %8 = vector.broadcast %c64_i32 : i32 to vector<8x128xi32>
    %9 = arith.cmpi slt, %7, %8 : vector<8x128xi32>
    %cst_7 = arith.constant 0.000000e+00 : f32
    %10 = vector.broadcast %cst_7 : f32 to vector<8x128xf32>
    %cst_8 = arith.constant 0.000000e+00 : f32
    %11 = vector.broadcast %cst_8 : f32 to vector<8x128xf32>
    %c0_i32 = arith.constant 0 : i32
    %c8_i32 = arith.constant 8 : i32
    %12 = arith.muli %c0_i32, %c8_i32 : i32
    %13 = tpu.assume_multiple %12, 8 : i32
    %14 = arith.index_cast %13 : i32 to index
    %c0_9 = arith.constant 0 : index
    %15 = vector.load %arg8[%14, %c0_9] : memref<128x256xf32, #tpu.memory_space<vmem>>, vector<8x256xf32>
    %c0_10 = arith.constant 0 : index
    %c0_11 = arith.constant 0 : index
    %16 = vector.load %arg4[%c0_10, %c0_11] : memref<128x256xf32, #tpu.memory_space<vmem>>, vector<128x256xf32>
    %cst_12 = arith.constant dense<0.000000e+00> : vector<8x256xf32>
    %17 = tpu.matmul %10, %16, %cst_12 {dimension_numbers = #tpu.dot_dimension_numbers<[1], [0], [0], [1], [0, 0, 1, 1], [], []>} : vector<8x128xf32>, vector<128x256xf32>, vector<8x256xf32> -> vector<8x256xf32>
    %18 = arith.addf %15, %17 : vector<8x256xf32>
    %19 = vector.extract_strided_slice %18 {offsets = [0, 0], sizes = [8, 128], strides = [1, 1]} : vector<8x256xf32> to vector<8x128xf32>
    %20 = vector.extract_strided_slice %18 {offsets = [0, 128], sizes = [8, 128], strides = [1, 1]} : vector<8x256xf32> to vector<8x128xf32>
    %21 = arith.negf %19 : vector<8x128xf32>
    %22 = math.exp %21 : vector<8x128xf32>
    %cst_13 = arith.constant 1.000000e+00 : f32
    %23 = vector.broadcast %cst_13 : f32 to vector<8x128xf32>
    %24 = arith.addf %23, %22 : vector<8x128xf32>
    %25 = arith.divf %23, %24 : vector<8x128xf32>
    %cst_14 = arith.constant 2.000000e+00 : f32
    %26 = vector.broadcast %cst_14 : f32 to vector<8x128xf32>
    %27 = arith.mulf %26, %20 : vector<8x128xf32>
    %28 = arith.select %9, %27, %20 : vector<8x128xi1>, vector<8x128xf32>
    %29 = arith.negf %28 : vector<8x128xf32>
    %30 = math.exp %29 : vector<8x128xf32>
    %cst_15 = arith.constant 1.000000e+00 : f32
    %31 = vector.broadcast %cst_15 : f32 to vector<8x128xf32>
    %32 = arith.addf %31, %30 : vector<8x128xf32>
    %33 = arith.divf %31, %32 : vector<8x128xf32>
    %cst_16 = arith.constant 2.000000e+00 : f32
    %34 = vector.broadcast %cst_16 : f32 to vector<8x128xf32>
    %35 = arith.mulf %34, %33 : vector<8x128xf32>
    %cst_17 = arith.constant 1.000000e+00 : f32
    %36 = vector.broadcast %cst_17 : f32 to vector<8x128xf32>
    %37 = arith.subf %35, %36 : vector<8x128xf32>
    %38 = arith.select %9, %37, %33 : vector<8x128xi1>, vector<8x128xf32>
    %39 = arith.select %9, %38, %11 : vector<8x128xi1>, vector<8x128xf32>
    %40 = arith.mulf %25, %39 : vector<8x128xf32>
    %c64_i32_18 = arith.constant 64 : i32
    %41 = tpu.dynamic_rotate %40 by %c64_i32_18 dim 1 : vector<8x128xf32>, i32 -> vector<8x128xf32>
    %42 = arith.addf %40, %41 : vector<8x128xf32>
    %43 = math.tanh %42 : vector<8x128xf32>
    %44 = arith.mulf %38, %43 : vector<8x128xf32>
    %c1_i32 = arith.constant 1 : i32
    %c8_i32_19 = arith.constant 8 : i32
    %45 = arith.muli %c1_i32, %c8_i32_19 : i32
    %46 = tpu.assume_multiple %45, 8 : i32
    %47 = arith.index_cast %46 : i32 to index
    %c0_20 = arith.constant 0 : index
    %48 = vector.load %arg8[%47, %c0_20] : memref<128x256xf32, #tpu.memory_space<vmem>>, vector<8x256xf32>
    %c0_21 = arith.constant 0 : index
    %c0_22 = arith.constant 0 : index
    %49 = vector.load %arg4[%c0_21, %c0_22] : memref<128x256xf32, #tpu.memory_space<vmem>>, vector<128x256xf32>
    %cst_23 = arith.constant dense<0.000000e+00> : vector<8x256xf32>
    %50 = tpu.matmul %44, %49, %cst_23 {dimension_numbers = #tpu.dot_dimension_numbers<[1], [0], [0], [1], [0, 0, 1, 1], [], []>} : vector<8x128xf32>, vector<128x256xf32>, vector<8x256xf32> -> vector<8x256xf32>
    %51 = arith.addf %48, %50 : vector<8x256xf32>
    %52 = vector.extract_strided_slice %51 {offsets = [0, 0], sizes = [8, 128], strides = [1, 1]} : vector<8x256xf32> to vector<8x128xf32>
    %53 = vector.extract_strided_slice %51 {offsets = [0, 128], sizes = [8, 128], strides = [1, 1]} : vector<8x256xf32> to vector<8x128xf32>
    %54 = arith.negf %52 : vector<8x128xf32>
    %55 = math.exp %54 : vector<8x128xf32>
    %cst_24 = arith.constant 1.000000e+00 : f32
    %56 = vector.broadcast %cst_24 : f32 to vector<8x128xf32>
    %57 = arith.addf %56, %55 : vector<8x128xf32>
    %58 = arith.divf %56, %57 : vector<8x128xf32>
    %cst_25 = arith.constant 2.000000e+00 : f32
    %59 = vector.broadcast %cst_25 : f32 to vector<8x128xf32>
    %60 = arith.mulf %59, %53 : vector<8x128xf32>
    %61 = arith.select %9, %60, %53 : vector<8x128xi1>, vector<8x128xf32>
    %62 = arith.negf %61 : vector<8x128xf32>
    %63 = math.exp %62 : vector<8x128xf32>
    %cst_26 = arith.constant 1.000000e+00 : f32
    %64 = vector.broadcast %cst_26 : f32 to vector<8x128xf32>
    %65 = arith.addf %64, %63 : vector<8x128xf32>
    %66 = arith.divf %64, %65 : vector<8x128xf32>
    %cst_27 = arith.constant 2.000000e+00 : f32
    %67 = vector.broadcast %cst_27 : f32 to vector<8x128xf32>
    %68 = arith.mulf %67, %66 : vector<8x128xf32>
    %cst_28 = arith.constant 1.000000e+00 : f32
    %69 = vector.broadcast %cst_28 : f32 to vector<8x128xf32>
    %70 = arith.subf %68, %69 : vector<8x128xf32>
    %71 = arith.select %9, %70, %66 : vector<8x128xi1>, vector<8x128xf32>
    %72 = arith.select %9, %71, %42 : vector<8x128xi1>, vector<8x128xf32>
    %73 = arith.mulf %58, %72 : vector<8x128xf32>
    %c64_i32_29 = arith.constant 64 : i32
    %74 = tpu.dynamic_rotate %73 by %c64_i32_29 dim 1 : vector<8x128xf32>, i32 -> vector<8x128xf32>
    %75 = arith.addf %73, %74 : vector<8x128xf32>
    %76 = math.tanh %75 : vector<8x128xf32>
    %77 = arith.mulf %71, %76 : vector<8x128xf32>
    %c2_i32 = arith.constant 2 : i32
    %c8_i32_30 = arith.constant 8 : i32
    %78 = arith.muli %c2_i32, %c8_i32_30 : i32
    %79 = tpu.assume_multiple %78, 8 : i32
    %80 = arith.index_cast %79 : i32 to index
    %c0_31 = arith.constant 0 : index
    %81 = vector.load %arg8[%80, %c0_31] : memref<128x256xf32, #tpu.memory_space<vmem>>, vector<8x256xf32>
    %c0_32 = arith.constant 0 : index
    %c0_33 = arith.constant 0 : index
    %82 = vector.load %arg4[%c0_32, %c0_33] : memref<128x256xf32, #tpu.memory_space<vmem>>, vector<128x256xf32>
    %cst_34 = arith.constant dense<0.000000e+00> : vector<8x256xf32>
    %83 = tpu.matmul %77, %82, %cst_34 {dimension_numbers = #tpu.dot_dimension_numbers<[1], [0], [0], [1], [0, 0, 1, 1], [], []>} : vector<8x128xf32>, vector<128x256xf32>, vector<8x256xf32> -> vector<8x256xf32>
    %84 = arith.addf %81, %83 : vector<8x256xf32>
    %85 = vector.extract_strided_slice %84 {offsets = [0, 0], sizes = [8, 128], strides = [1, 1]} : vector<8x256xf32> to vector<8x128xf32>
    %86 = vector.extract_strided_slice %84 {offsets = [0, 128], sizes = [8, 128], strides = [1, 1]} : vector<8x256xf32> to vector<8x128xf32>
    %87 = arith.negf %85 : vector<8x128xf32>
    %88 = math.exp %87 : vector<8x128xf32>
    %cst_35 = arith.constant 1.000000e+00 : f32
    %89 = vector.broadcast %cst_35 : f32 to vector<8x128xf32>
    %90 = arith.addf %89, %88 : vector<8x128xf32>
    %91 = arith.divf %89, %90 : vector<8x128xf32>
    %cst_36 = arith.constant 2.000000e+00 : f32
    %92 = vector.broadcast %cst_36 : f32 to vector<8x128xf32>
    %93 = arith.mulf %92, %86 : vector<8x128xf32>
    %94 = arith.select %9, %93, %86 : vector<8x128xi1>, vector<8x128xf32>
    %95 = arith.negf %94 : vector<8x128xf32>
    %96 = math.exp %95 : vector<8x128xf32>
    %cst_37 = arith.constant 1.000000e+00 : f32
    %97 = vector.broadcast %cst_37 : f32 to vector<8x128xf32>
    %98 = arith.addf %97, %96 : vector<8x128xf32>
    %99 = arith.divf %97, %98 : vector<8x128xf32>
    %cst_38 = arith.constant 2.000000e+00 : f32
    %100 = vector.broadcast %cst_38 : f32 to vector<8x128xf32>
    %101 = arith.mulf %100, %99 : vector<8x128xf32>
    %cst_39 = arith.constant 1.000000e+00 : f32
    %102 = vector.broadcast %cst_39 : f32 to vector<8x128xf32>
    %103 = arith.subf %101, %102 : vector<8x128xf32>
    %104 = arith.select %9, %103, %99 : vector<8x128xi1>, vector<8x128xf32>
    %105 = arith.select %9, %104, %75 : vector<8x128xi1>, vector<8x128xf32>
    %106 = arith.mulf %91, %105 : vector<8x128xf32>
    %c64_i32_40 = arith.constant 64 : i32
    %107 = tpu.dynamic_rotate %106 by %c64_i32_40 dim 1 : vector<8x128xf32>, i32 -> vector<8x128xf32>
    %108 = arith.addf %106, %107 : vector<8x128xf32>
    %109 = math.tanh %108 : vector<8x128xf32>
    %110 = arith.mulf %104, %109 : vector<8x128xf32>
    %c3_i32 = arith.constant 3 : i32
    %c8_i32_41 = arith.constant 8 : i32
    %111 = arith.muli %c3_i32, %c8_i32_41 : i32
    %112 = tpu.assume_multiple %111, 8 : i32
    %113 = arith.index_cast %112 : i32 to index
    %c0_42 = arith.constant 0 : index
    %114 = vector.load %arg8[%113, %c0_42] : memref<128x256xf32, #tpu.memory_space<vmem>>, vector<8x256xf32>
    %c0_43 = arith.constant 0 : index
    %c0_44 = arith.constant 0 : index
    %115 = vector.load %arg4[%c0_43, %c0_44] : memref<128x256xf32, #tpu.memory_space<vmem>>, vector<128x256xf32>
    %cst_45 = arith.constant dense<0.000000e+00> : vector<8x256xf32>
    %116 = tpu.matmul %110, %115, %cst_45 {dimension_numbers = #tpu.dot_dimension_numbers<[1], [0], [0], [1], [0, 0, 1, 1], [], []>} : vector<8x128xf32>, vector<128x256xf32>, vector<8x256xf32> -> vector<8x256xf32>
    %117 = arith.addf %114, %116 : vector<8x256xf32>
    %118 = vector.extract_strided_slice %117 {offsets = [0, 0], sizes = [8, 128], strides = [1, 1]} : vector<8x256xf32> to vector<8x128xf32>
    %119 = vector.extract_strided_slice %117 {offsets = [0, 128], sizes = [8, 128], strides = [1, 1]} : vector<8x256xf32> to vector<8x128xf32>
    %120 = arith.negf %118 : vector<8x128xf32>
    %121 = math.exp %120 : vector<8x128xf32>
    %cst_46 = arith.constant 1.000000e+00 : f32
    %122 = vector.broadcast %cst_46 : f32 to vector<8x128xf32>
    %123 = arith.addf %122, %121 : vector<8x128xf32>
    %124 = arith.divf %122, %123 : vector<8x128xf32>
    %cst_47 = arith.constant 2.000000e+00 : f32
    %125 = vector.broadcast %cst_47 : f32 to vector<8x128xf32>
    %126 = arith.mulf %125, %119 : vector<8x128xf32>
    %127 = arith.select %9, %126, %119 : vector<8x128xi1>, vector<8x128xf32>
    %128 = arith.negf %127 : vector<8x128xf32>
    %129 = math.exp %128 : vector<8x128xf32>
    %cst_48 = arith.constant 1.000000e+00 : f32
    %130 = vector.broadcast %cst_48 : f32 to vector<8x128xf32>
    %131 = arith.addf %130, %129 : vector<8x128xf32>
    %132 = arith.divf %130, %131 : vector<8x128xf32>
    %cst_49 = arith.constant 2.000000e+00 : f32
    %133 = vector.broadcast %cst_49 : f32 to vector<8x128xf32>
    %134 = arith.mulf %133, %132 : vector<8x128xf32>
    %cst_50 = arith.constant 1.000000e+00 : f32
    %135 = vector.broadcast %cst_50 : f32 to vector<8x128xf32>
    %136 = arith.subf %134, %135 : vector<8x128xf32>
    %137 = arith.select %9, %136, %132 : vector<8x128xi1>, vector<8x128xf32>
    %138 = arith.select %9, %137, %108 : vector<8x128xi1>, vector<8x128xf32>
    %139 = arith.mulf %124, %138 : vector<8x128xf32>
    %c64_i32_51 = arith.constant 64 : i32
    %140 = tpu.dynamic_rotate %139 by %c64_i32_51 dim 1 : vector<8x128xf32>, i32 -> vector<8x128xf32>
    %141 = arith.addf %139, %140 : vector<8x128xf32>
    %142 = math.tanh %141 : vector<8x128xf32>
    %143 = arith.mulf %137, %142 : vector<8x128xf32>
    %c4_i32 = arith.constant 4 : i32
    %c8_i32_52 = arith.constant 8 : i32
    %144 = arith.muli %c4_i32, %c8_i32_52 : i32
    %145 = tpu.assume_multiple %144, 8 : i32
    %146 = arith.index_cast %145 : i32 to index
    %c0_53 = arith.constant 0 : index
    %147 = vector.load %arg8[%146, %c0_53] : memref<128x256xf32, #tpu.memory_space<vmem>>, vector<8x256xf32>
    %c0_54 = arith.constant 0 : index
    %c0_55 = arith.constant 0 : index
    %148 = vector.load %arg4[%c0_54, %c0_55] : memref<128x256xf32, #tpu.memory_space<vmem>>, vector<128x256xf32>
    %cst_56 = arith.constant dense<0.000000e+00> : vector<8x256xf32>
    %149 = tpu.matmul %143, %148, %cst_56 {dimension_numbers = #tpu.dot_dimension_numbers<[1], [0], [0], [1], [0, 0, 1, 1], [], []>} : vector<8x128xf32>, vector<128x256xf32>, vector<8x256xf32> -> vector<8x256xf32>
    %150 = arith.addf %147, %149 : vector<8x256xf32>
    %151 = vector.extract_strided_slice %150 {offsets = [0, 0], sizes = [8, 128], strides = [1, 1]} : vector<8x256xf32> to vector<8x128xf32>
    %152 = vector.extract_strided_slice %150 {offsets = [0, 128], sizes = [8, 128], strides = [1, 1]} : vector<8x256xf32> to vector<8x128xf32>
    %153 = arith.negf %151 : vector<8x128xf32>
    %154 = math.exp %153 : vector<8x128xf32>
    %cst_57 = arith.constant 1.000000e+00 : f32
    %155 = vector.broadcast %cst_57 : f32 to vector<8x128xf32>
    %156 = arith.addf %155, %154 : vector<8x128xf32>
    %157 = arith.divf %155, %156 : vector<8x128xf32>
    %cst_58 = arith.constant 2.000000e+00 : f32
    %158 = vector.broadcast %cst_58 : f32 to vector<8x128xf32>
    %159 = arith.mulf %158, %152 : vector<8x128xf32>
    %160 = arith.select %9, %159, %152 : vector<8x128xi1>, vector<8x128xf32>
    %161 = arith.negf %160 : vector<8x128xf32>
    %162 = math.exp %161 : vector<8x128xf32>
    %cst_59 = arith.constant 1.000000e+00 : f32
    %163 = vector.broadcast %cst_59 : f32 to vector<8x128xf32>
    %164 = arith.addf %163, %162 : vector<8x128xf32>
    %165 = arith.divf %163, %164 : vector<8x128xf32>
    %cst_60 = arith.constant 2.000000e+00 : f32
    %166 = vector.broadcast %cst_60 : f32 to vector<8x128xf32>
    %167 = arith.mulf %166, %165 : vector<8x128xf32>
    %cst_61 = arith.constant 1.000000e+00 : f32
    %168 = vector.broadcast %cst_61 : f32 to vector<8x128xf32>
    %169 = arith.subf %167, %168 : vector<8x128xf32>
    %170 = arith.select %9, %169, %165 : vector<8x128xi1>, vector<8x128xf32>
    %171 = arith.select %9, %170, %141 : vector<8x128xi1>, vector<8x128xf32>
    %172 = arith.mulf %157, %171 : vector<8x128xf32>
    %c64_i32_62 = arith.constant 64 : i32
    %173 = tpu.dynamic_rotate %172 by %c64_i32_62 dim 1 : vector<8x128xf32>, i32 -> vector<8x128xf32>
    %174 = arith.addf %172, %173 : vector<8x128xf32>
    %175 = math.tanh %174 : vector<8x128xf32>
    %176 = arith.mulf %170, %175 : vector<8x128xf32>
    %c5_i32 = arith.constant 5 : i32
    %c8_i32_63 = arith.constant 8 : i32
    %177 = arith.muli %c5_i32, %c8_i32_63 : i32
    %178 = tpu.assume_multiple %177, 8 : i32
    %179 = arith.index_cast %178 : i32 to index
    %c0_64 = arith.constant 0 : index
    %180 = vector.load %arg8[%179, %c0_64] : memref<128x256xf32, #tpu.memory_space<vmem>>, vector<8x256xf32>
    %c0_65 = arith.constant 0 : index
    %c0_66 = arith.constant 0 : index
    %181 = vector.load %arg4[%c0_65, %c0_66] : memref<128x256xf32, #tpu.memory_space<vmem>>, vector<128x256xf32>
    %cst_67 = arith.constant dense<0.000000e+00> : vector<8x256xf32>
    %182 = tpu.matmul %176, %181, %cst_67 {dimension_numbers = #tpu.dot_dimension_numbers<[1], [0], [0], [1], [0, 0, 1, 1], [], []>} : vector<8x128xf32>, vector<128x256xf32>, vector<8x256xf32> -> vector<8x256xf32>
    %183 = arith.addf %180, %182 : vector<8x256xf32>
    %184 = vector.extract_strided_slice %183 {offsets = [0, 0], sizes = [8, 128], strides = [1, 1]} : vector<8x256xf32> to vector<8x128xf32>
    %185 = vector.extract_strided_slice %183 {offsets = [0, 128], sizes = [8, 128], strides = [1, 1]} : vector<8x256xf32> to vector<8x128xf32>
    %186 = arith.negf %184 : vector<8x128xf32>
    %187 = math.exp %186 : vector<8x128xf32>
    %cst_68 = arith.constant 1.000000e+00 : f32
    %188 = vector.broadcast %cst_68 : f32 to vector<8x128xf32>
    %189 = arith.addf %188, %187 : vector<8x128xf32>
    %190 = arith.divf %188, %189 : vector<8x128xf32>
    %cst_69 = arith.constant 2.000000e+00 : f32
    %191 = vector.broadcast %cst_69 : f32 to vector<8x128xf32>
    %192 = arith.mulf %191, %185 : vector<8x128xf32>
    %193 = arith.select %9, %192, %185 : vector<8x128xi1>, vector<8x128xf32>
    %194 = arith.negf %193 : vector<8x128xf32>
    %195 = math.exp %194 : vector<8x128xf32>
    %cst_70 = arith.constant 1.000000e+00 : f32
    %196 = vector.broadcast %cst_70 : f32 to vector<8x128xf32>
    %197 = arith.addf %196, %195 : vector<8x128xf32>
    %198 = arith.divf %196, %197 : vector<8x128xf32>
    %cst_71 = arith.constant 2.000000e+00 : f32
    %199 = vector.broadcast %cst_71 : f32 to vector<8x128xf32>
    %200 = arith.mulf %199, %198 : vector<8x128xf32>
    %cst_72 = arith.constant 1.000000e+00 : f32
    %201 = vector.broadcast %cst_72 : f32 to vector<8x128xf32>
    %202 = arith.subf %200, %201 : vector<8x128xf32>
    %203 = arith.select %9, %202, %198 : vector<8x128xi1>, vector<8x128xf32>
    %204 = arith.select %9, %203, %174 : vector<8x128xi1>, vector<8x128xf32>
    %205 = arith.mulf %190, %204 : vector<8x128xf32>
    %c64_i32_73 = arith.constant 64 : i32
    %206 = tpu.dynamic_rotate %205 by %c64_i32_73 dim 1 : vector<8x128xf32>, i32 -> vector<8x128xf32>
    %207 = arith.addf %205, %206 : vector<8x128xf32>
    %208 = math.tanh %207 : vector<8x128xf32>
    %209 = arith.mulf %203, %208 : vector<8x128xf32>
    %c6_i32 = arith.constant 6 : i32
    %c8_i32_74 = arith.constant 8 : i32
    %210 = arith.muli %c6_i32, %c8_i32_74 : i32
    %211 = tpu.assume_multiple %210, 8 : i32
    %212 = arith.index_cast %211 : i32 to index
    %c0_75 = arith.constant 0 : index
    %213 = vector.load %arg8[%212, %c0_75] : memref<128x256xf32, #tpu.memory_space<vmem>>, vector<8x256xf32>
    %c0_76 = arith.constant 0 : index
    %c0_77 = arith.constant 0 : index
    %214 = vector.load %arg4[%c0_76, %c0_77] : memref<128x256xf32, #tpu.memory_space<vmem>>, vector<128x256xf32>
    %cst_78 = arith.constant dense<0.000000e+00> : vector<8x256xf32>
    %215 = tpu.matmul %209, %214, %cst_78 {dimension_numbers = #tpu.dot_dimension_numbers<[1], [0], [0], [1], [0, 0, 1, 1], [], []>} : vector<8x128xf32>, vector<128x256xf32>, vector<8x256xf32> -> vector<8x256xf32>
    %216 = arith.addf %213, %215 : vector<8x256xf32>
    %217 = vector.extract_strided_slice %216 {offsets = [0, 0], sizes = [8, 128], strides = [1, 1]} : vector<8x256xf32> to vector<8x128xf32>
    %218 = vector.extract_strided_slice %216 {offsets = [0, 128], sizes = [8, 128], strides = [1, 1]} : vector<8x256xf32> to vector<8x128xf32>
    %219 = arith.negf %217 : vector<8x128xf32>
    %220 = math.exp %219 : vector<8x128xf32>
    %cst_79 = arith.constant 1.000000e+00 : f32
    %221 = vector.broadcast %cst_79 : f32 to vector<8x128xf32>
    %222 = arith.addf %221, %220 : vector<8x128xf32>
    %223 = arith.divf %221, %222 : vector<8x128xf32>
    %cst_80 = arith.constant 2.000000e+00 : f32
    %224 = vector.broadcast %cst_80 : f32 to vector<8x128xf32>
    %225 = arith.mulf %224, %218 : vector<8x128xf32>
    %226 = arith.select %9, %225, %218 : vector<8x128xi1>, vector<8x128xf32>
    %227 = arith.negf %226 : vector<8x128xf32>
    %228 = math.exp %227 : vector<8x128xf32>
    %cst_81 = arith.constant 1.000000e+00 : f32
    %229 = vector.broadcast %cst_81 : f32 to vector<8x128xf32>
    %230 = arith.addf %229, %228 : vector<8x128xf32>
    %231 = arith.divf %229, %230 : vector<8x128xf32>
    %cst_82 = arith.constant 2.000000e+00 : f32
    %232 = vector.broadcast %cst_82 : f32 to vector<8x128xf32>
    %233 = arith.mulf %232, %231 : vector<8x128xf32>
    %cst_83 = arith.constant 1.000000e+00 : f32
    %234 = vector.broadcast %cst_83 : f32 to vector<8x128xf32>
    %235 = arith.subf %233, %234 : vector<8x128xf32>
    %236 = arith.select %9, %235, %231 : vector<8x128xi1>, vector<8x128xf32>
    %237 = arith.select %9, %236, %207 : vector<8x128xi1>, vector<8x128xf32>
    %238 = arith.mulf %223, %237 : vector<8x128xf32>
    %c64_i32_84 = arith.constant 64 : i32
    %239 = tpu.dynamic_rotate %238 by %c64_i32_84 dim 1 : vector<8x128xf32>, i32 -> vector<8x128xf32>
    %240 = arith.addf %238, %239 : vector<8x128xf32>
    %241 = math.tanh %240 : vector<8x128xf32>
    %242 = arith.mulf %236, %241 : vector<8x128xf32>
    %c7_i32 = arith.constant 7 : i32
    %c8_i32_85 = arith.constant 8 : i32
    %243 = arith.muli %c7_i32, %c8_i32_85 : i32
    %244 = tpu.assume_multiple %243, 8 : i32
    %245 = arith.index_cast %244 : i32 to index
    %c0_86 = arith.constant 0 : index
    %246 = vector.load %arg8[%245, %c0_86] : memref<128x256xf32, #tpu.memory_space<vmem>>, vector<8x256xf32>
    %c0_87 = arith.constant 0 : index
    %c0_88 = arith.constant 0 : index
    %247 = vector.load %arg4[%c0_87, %c0_88] : memref<128x256xf32, #tpu.memory_space<vmem>>, vector<128x256xf32>
    %cst_89 = arith.constant dense<0.000000e+00> : vector<8x256xf32>
    %248 = tpu.matmul %242, %247, %cst_89 {dimension_numbers = #tpu.dot_dimension_numbers<[1], [0], [0], [1], [0, 0, 1, 1], [], []>} : vector<8x128xf32>, vector<128x256xf32>, vector<8x256xf32> -> vector<8x256xf32>
    %249 = arith.addf %246, %248 : vector<8x256xf32>
    %250 = vector.extract_strided_slice %249 {offsets = [0, 0], sizes = [8, 128], strides = [1, 1]} : vector<8x256xf32> to vector<8x128xf32>
    %251 = vector.extract_strided_slice %249 {offsets = [0, 128], sizes = [8, 128], strides = [1, 1]} : vector<8x256xf32> to vector<8x128xf32>
    %252 = arith.negf %250 : vector<8x128xf32>
    %253 = math.exp %252 : vector<8x128xf32>
    %cst_90 = arith.constant 1.000000e+00 : f32
    %254 = vector.broadcast %cst_90 : f32 to vector<8x128xf32>
    %255 = arith.addf %254, %253 : vector<8x128xf32>
    %256 = arith.divf %254, %255 : vector<8x128xf32>
    %cst_91 = arith.constant 2.000000e+00 : f32
    %257 = vector.broadcast %cst_91 : f32 to vector<8x128xf32>
    %258 = arith.mulf %257, %251 : vector<8x128xf32>
    %259 = arith.select %9, %258, %251 : vector<8x128xi1>, vector<8x128xf32>
    %260 = arith.negf %259 : vector<8x128xf32>
    %261 = math.exp %260 : vector<8x128xf32>
    %cst_92 = arith.constant 1.000000e+00 : f32
    %262 = vector.broadcast %cst_92 : f32 to vector<8x128xf32>
    %263 = arith.addf %262, %261 : vector<8x128xf32>
    %264 = arith.divf %262, %263 : vector<8x128xf32>
    %cst_93 = arith.constant 2.000000e+00 : f32
    %265 = vector.broadcast %cst_93 : f32 to vector<8x128xf32>
    %266 = arith.mulf %265, %264 : vector<8x128xf32>
    %cst_94 = arith.constant 1.000000e+00 : f32
    %267 = vector.broadcast %cst_94 : f32 to vector<8x128xf32>
    %268 = arith.subf %266, %267 : vector<8x128xf32>
    %269 = arith.select %9, %268, %264 : vector<8x128xi1>, vector<8x128xf32>
    %270 = arith.select %9, %269, %240 : vector<8x128xi1>, vector<8x128xf32>
    %271 = arith.mulf %256, %270 : vector<8x128xf32>
    %c64_i32_95 = arith.constant 64 : i32
    %272 = tpu.dynamic_rotate %271 by %c64_i32_95 dim 1 : vector<8x128xf32>, i32 -> vector<8x128xf32>
    %273 = arith.addf %271, %272 : vector<8x128xf32>
    %274 = math.tanh %273 : vector<8x128xf32>
    %275 = arith.mulf %269, %274 : vector<8x128xf32>
    %c8_i32_96 = arith.constant 8 : i32
    %c8_i32_97 = arith.constant 8 : i32
    %276 = arith.muli %c8_i32_96, %c8_i32_97 : i32
    %277 = tpu.assume_multiple %276, 8 : i32
    %278 = arith.index_cast %277 : i32 to index
    %c0_98 = arith.constant 0 : index
    %279 = vector.load %arg8[%278, %c0_98] : memref<128x256xf32, #tpu.memory_space<vmem>>, vector<8x256xf32>
    %c0_99 = arith.constant 0 : index
    %c0_100 = arith.constant 0 : index
    %280 = vector.load %arg4[%c0_99, %c0_100] : memref<128x256xf32, #tpu.memory_space<vmem>>, vector<128x256xf32>
    %cst_101 = arith.constant dense<0.000000e+00> : vector<8x256xf32>
    %281 = tpu.matmul %275, %280, %cst_101 {dimension_numbers = #tpu.dot_dimension_numbers<[1], [0], [0], [1], [0, 0, 1, 1], [], []>} : vector<8x128xf32>, vector<128x256xf32>, vector<8x256xf32> -> vector<8x256xf32>
    %282 = arith.addf %279, %281 : vector<8x256xf32>
    %283 = vector.extract_strided_slice %282 {offsets = [0, 0], sizes = [8, 128], strides = [1, 1]} : vector<8x256xf32> to vector<8x128xf32>
    %284 = vector.extract_strided_slice %282 {offsets = [0, 128], sizes = [8, 128], strides = [1, 1]} : vector<8x256xf32> to vector<8x128xf32>
    %285 = arith.negf %283 : vector<8x128xf32>
    %286 = math.exp %285 : vector<8x128xf32>
    %cst_102 = arith.constant 1.000000e+00 : f32
    %287 = vector.broadcast %cst_102 : f32 to vector<8x128xf32>
    %288 = arith.addf %287, %286 : vector<8x128xf32>
    %289 = arith.divf %287, %288 : vector<8x128xf32>
    %cst_103 = arith.constant 2.000000e+00 : f32
    %290 = vector.broadcast %cst_103 : f32 to vector<8x128xf32>
    %291 = arith.mulf %290, %284 : vector<8x128xf32>
    %292 = arith.select %9, %291, %284 : vector<8x128xi1>, vector<8x128xf32>
    %293 = arith.negf %292 : vector<8x128xf32>
    %294 = math.exp %293 : vector<8x128xf32>
    %cst_104 = arith.constant 1.000000e+00 : f32
    %295 = vector.broadcast %cst_104 : f32 to vector<8x128xf32>
    %296 = arith.addf %295, %294 : vector<8x128xf32>
    %297 = arith.divf %295, %296 : vector<8x128xf32>
    %cst_105 = arith.constant 2.000000e+00 : f32
    %298 = vector.broadcast %cst_105 : f32 to vector<8x128xf32>
    %299 = arith.mulf %298, %297 : vector<8x128xf32>
    %cst_106 = arith.constant 1.000000e+00 : f32
    %300 = vector.broadcast %cst_106 : f32 to vector<8x128xf32>
    %301 = arith.subf %299, %300 : vector<8x128xf32>
    %302 = arith.select %9, %301, %297 : vector<8x128xi1>, vector<8x128xf32>
    %303 = arith.select %9, %302, %273 : vector<8x128xi1>, vector<8x128xf32>
    %304 = arith.mulf %289, %303 : vector<8x128xf32>
    %c64_i32_107 = arith.constant 64 : i32
    %305 = tpu.dynamic_rotate %304 by %c64_i32_107 dim 1 : vector<8x128xf32>, i32 -> vector<8x128xf32>
    %306 = arith.addf %304, %305 : vector<8x128xf32>
    %307 = math.tanh %306 : vector<8x128xf32>
    %308 = arith.mulf %302, %307 : vector<8x128xf32>
    %c9_i32 = arith.constant 9 : i32
    %c8_i32_108 = arith.constant 8 : i32
    %309 = arith.muli %c9_i32, %c8_i32_108 : i32
    %310 = tpu.assume_multiple %309, 8 : i32
    %311 = arith.index_cast %310 : i32 to index
    %c0_109 = arith.constant 0 : index
    %312 = vector.load %arg8[%311, %c0_109] : memref<128x256xf32, #tpu.memory_space<vmem>>, vector<8x256xf32>
    %c0_110 = arith.constant 0 : index
    %c0_111 = arith.constant 0 : index
    %313 = vector.load %arg4[%c0_110, %c0_111] : memref<128x256xf32, #tpu.memory_space<vmem>>, vector<128x256xf32>
    %cst_112 = arith.constant dense<0.000000e+00> : vector<8x256xf32>
    %314 = tpu.matmul %308, %313, %cst_112 {dimension_numbers = #tpu.dot_dimension_numbers<[1], [0], [0], [1], [0, 0, 1, 1], [], []>} : vector<8x128xf32>, vector<128x256xf32>, vector<8x256xf32> -> vector<8x256xf32>
    %315 = arith.addf %312, %314 : vector<8x256xf32>
    %316 = vector.extract_strided_slice %315 {offsets = [0, 0], sizes = [8, 128], strides = [1, 1]} : vector<8x256xf32> to vector<8x128xf32>
    %317 = vector.extract_strided_slice %315 {offsets = [0, 128], sizes = [8, 128], strides = [1, 1]} : vector<8x256xf32> to vector<8x128xf32>
    %318 = arith.negf %316 : vector<8x128xf32>
    %319 = math.exp %318 : vector<8x128xf32>
    %cst_113 = arith.constant 1.000000e+00 : f32
    %320 = vector.broadcast %cst_113 : f32 to vector<8x128xf32>
    %321 = arith.addf %320, %319 : vector<8x128xf32>
    %322 = arith.divf %320, %321 : vector<8x128xf32>
    %cst_114 = arith.constant 2.000000e+00 : f32
    %323 = vector.broadcast %cst_114 : f32 to vector<8x128xf32>
    %324 = arith.mulf %323, %317 : vector<8x128xf32>
    %325 = arith.select %9, %324, %317 : vector<8x128xi1>, vector<8x128xf32>
    %326 = arith.negf %325 : vector<8x128xf32>
    %327 = math.exp %326 : vector<8x128xf32>
    %cst_115 = arith.constant 1.000000e+00 : f32
    %328 = vector.broadcast %cst_115 : f32 to vector<8x128xf32>
    %329 = arith.addf %328, %327 : vector<8x128xf32>
    %330 = arith.divf %328, %329 : vector<8x128xf32>
    %cst_116 = arith.constant 2.000000e+00 : f32
    %331 = vector.broadcast %cst_116 : f32 to vector<8x128xf32>
    %332 = arith.mulf %331, %330 : vector<8x128xf32>
    %cst_117 = arith.constant 1.000000e+00 : f32
    %333 = vector.broadcast %cst_117 : f32 to vector<8x128xf32>
    %334 = arith.subf %332, %333 : vector<8x128xf32>
    %335 = arith.select %9, %334, %330 : vector<8x128xi1>, vector<8x128xf32>
    %336 = arith.select %9, %335, %306 : vector<8x128xi1>, vector<8x128xf32>
    %337 = arith.mulf %322, %336 : vector<8x128xf32>
    %c64_i32_118 = arith.constant 64 : i32
    %338 = tpu.dynamic_rotate %337 by %c64_i32_118 dim 1 : vector<8x128xf32>, i32 -> vector<8x128xf32>
    %339 = arith.addf %337, %338 : vector<8x128xf32>
    %340 = math.tanh %339 : vector<8x128xf32>
    %341 = arith.mulf %335, %340 : vector<8x128xf32>
    %c10_i32 = arith.constant 10 : i32
    %c8_i32_119 = arith.constant 8 : i32
    %342 = arith.muli %c10_i32, %c8_i32_119 : i32
    %343 = tpu.assume_multiple %342, 8 : i32
    %344 = arith.index_cast %343 : i32 to index
    %c0_120 = arith.constant 0 : index
    %345 = vector.load %arg8[%344, %c0_120] : memref<128x256xf32, #tpu.memory_space<vmem>>, vector<8x256xf32>
    %c0_121 = arith.constant 0 : index
    %c0_122 = arith.constant 0 : index
    %346 = vector.load %arg4[%c0_121, %c0_122] : memref<128x256xf32, #tpu.memory_space<vmem>>, vector<128x256xf32>
    %cst_123 = arith.constant dense<0.000000e+00> : vector<8x256xf32>
    %347 = tpu.matmul %341, %346, %cst_123 {dimension_numbers = #tpu.dot_dimension_numbers<[1], [0], [0], [1], [0, 0, 1, 1], [], []>} : vector<8x128xf32>, vector<128x256xf32>, vector<8x256xf32> -> vector<8x256xf32>
    %348 = arith.addf %345, %347 : vector<8x256xf32>
    %349 = vector.extract_strided_slice %348 {offsets = [0, 0], sizes = [8, 128], strides = [1, 1]} : vector<8x256xf32> to vector<8x128xf32>
    %350 = vector.extract_strided_slice %348 {offsets = [0, 128], sizes = [8, 128], strides = [1, 1]} : vector<8x256xf32> to vector<8x128xf32>
    %351 = arith.negf %349 : vector<8x128xf32>
    %352 = math.exp %351 : vector<8x128xf32>
    %cst_124 = arith.constant 1.000000e+00 : f32
    %353 = vector.broadcast %cst_124 : f32 to vector<8x128xf32>
    %354 = arith.addf %353, %352 : vector<8x128xf32>
    %355 = arith.divf %353, %354 : vector<8x128xf32>
    %cst_125 = arith.constant 2.000000e+00 : f32
    %356 = vector.broadcast %cst_125 : f32 to vector<8x128xf32>
    %357 = arith.mulf %356, %350 : vector<8x128xf32>
    %358 = arith.select %9, %357, %350 : vector<8x128xi1>, vector<8x128xf32>
    %359 = arith.negf %358 : vector<8x128xf32>
    %360 = math.exp %359 : vector<8x128xf32>
    %cst_126 = arith.constant 1.000000e+00 : f32
    %361 = vector.broadcast %cst_126 : f32 to vector<8x128xf32>
    %362 = arith.addf %361, %360 : vector<8x128xf32>
    %363 = arith.divf %361, %362 : vector<8x128xf32>
    %cst_127 = arith.constant 2.000000e+00 : f32
    %364 = vector.broadcast %cst_127 : f32 to vector<8x128xf32>
    %365 = arith.mulf %364, %363 : vector<8x128xf32>
    %cst_128 = arith.constant 1.000000e+00 : f32
    %366 = vector.broadcast %cst_128 : f32 to vector<8x128xf32>
    %367 = arith.subf %365, %366 : vector<8x128xf32>
    %368 = arith.select %9, %367, %363 : vector<8x128xi1>, vector<8x128xf32>
    %369 = arith.select %9, %368, %339 : vector<8x128xi1>, vector<8x128xf32>
    %370 = arith.mulf %355, %369 : vector<8x128xf32>
    %c64_i32_129 = arith.constant 64 : i32
    %371 = tpu.dynamic_rotate %370 by %c64_i32_129 dim 1 : vector<8x128xf32>, i32 -> vector<8x128xf32>
    %372 = arith.addf %370, %371 : vector<8x128xf32>
    %373 = math.tanh %372 : vector<8x128xf32>
    %374 = arith.mulf %368, %373 : vector<8x128xf32>
    %c11_i32 = arith.constant 11 : i32
    %c8_i32_130 = arith.constant 8 : i32
    %375 = arith.muli %c11_i32, %c8_i32_130 : i32
    %376 = tpu.assume_multiple %375, 8 : i32
    %377 = arith.index_cast %376 : i32 to index
    %c0_131 = arith.constant 0 : index
    %378 = vector.load %arg8[%377, %c0_131] : memref<128x256xf32, #tpu.memory_space<vmem>>, vector<8x256xf32>
    %c0_132 = arith.constant 0 : index
    %c0_133 = arith.constant 0 : index
    %379 = vector.load %arg4[%c0_132, %c0_133] : memref<128x256xf32, #tpu.memory_space<vmem>>, vector<128x256xf32>
    %cst_134 = arith.constant dense<0.000000e+00> : vector<8x256xf32>
    %380 = tpu.matmul %374, %379, %cst_134 {dimension_numbers = #tpu.dot_dimension_numbers<[1], [0], [0], [1], [0, 0, 1, 1], [], []>} : vector<8x128xf32>, vector<128x256xf32>, vector<8x256xf32> -> vector<8x256xf32>
    %381 = arith.addf %378, %380 : vector<8x256xf32>
    %382 = vector.extract_strided_slice %381 {offsets = [0, 0], sizes = [8, 128], strides = [1, 1]} : vector<8x256xf32> to vector<8x128xf32>
    %383 = vector.extract_strided_slice %381 {offsets = [0, 128], sizes = [8, 128], strides = [1, 1]} : vector<8x256xf32> to vector<8x128xf32>
    %384 = arith.negf %382 : vector<8x128xf32>
    %385 = math.exp %384 : vector<8x128xf32>
    %cst_135 = arith.constant 1.000000e+00 : f32
    %386 = vector.broadcast %cst_135 : f32 to vector<8x128xf32>
    %387 = arith.addf %386, %385 : vector<8x128xf32>
    %388 = arith.divf %386, %387 : vector<8x128xf32>
    %cst_136 = arith.constant 2.000000e+00 : f32
    %389 = vector.broadcast %cst_136 : f32 to vector<8x128xf32>
    %390 = arith.mulf %389, %383 : vector<8x128xf32>
    %391 = arith.select %9, %390, %383 : vector<8x128xi1>, vector<8x128xf32>
    %392 = arith.negf %391 : vector<8x128xf32>
    %393 = math.exp %392 : vector<8x128xf32>
    %cst_137 = arith.constant 1.000000e+00 : f32
    %394 = vector.broadcast %cst_137 : f32 to vector<8x128xf32>
    %395 = arith.addf %394, %393 : vector<8x128xf32>
    %396 = arith.divf %394, %395 : vector<8x128xf32>
    %cst_138 = arith.constant 2.000000e+00 : f32
    %397 = vector.broadcast %cst_138 : f32 to vector<8x128xf32>
    %398 = arith.mulf %397, %396 : vector<8x128xf32>
    %cst_139 = arith.constant 1.000000e+00 : f32
    %399 = vector.broadcast %cst_139 : f32 to vector<8x128xf32>
    %400 = arith.subf %398, %399 : vector<8x128xf32>
    %401 = arith.select %9, %400, %396 : vector<8x128xi1>, vector<8x128xf32>
    %402 = arith.select %9, %401, %372 : vector<8x128xi1>, vector<8x128xf32>
    %403 = arith.mulf %388, %402 : vector<8x128xf32>
    %c64_i32_140 = arith.constant 64 : i32
    %404 = tpu.dynamic_rotate %403 by %c64_i32_140 dim 1 : vector<8x128xf32>, i32 -> vector<8x128xf32>
    %405 = arith.addf %403, %404 : vector<8x128xf32>
    %406 = math.tanh %405 : vector<8x128xf32>
    %407 = arith.mulf %401, %406 : vector<8x128xf32>
    %c12_i32 = arith.constant 12 : i32
    %c8_i32_141 = arith.constant 8 : i32
    %408 = arith.muli %c12_i32, %c8_i32_141 : i32
    %409 = tpu.assume_multiple %408, 8 : i32
    %410 = arith.index_cast %409 : i32 to index
    %c0_142 = arith.constant 0 : index
    %411 = vector.load %arg8[%410, %c0_142] : memref<128x256xf32, #tpu.memory_space<vmem>>, vector<8x256xf32>
    %c0_143 = arith.constant 0 : index
    %c0_144 = arith.constant 0 : index
    %412 = vector.load %arg4[%c0_143, %c0_144] : memref<128x256xf32, #tpu.memory_space<vmem>>, vector<128x256xf32>
    %cst_145 = arith.constant dense<0.000000e+00> : vector<8x256xf32>
    %413 = tpu.matmul %407, %412, %cst_145 {dimension_numbers = #tpu.dot_dimension_numbers<[1], [0], [0], [1], [0, 0, 1, 1], [], []>} : vector<8x128xf32>, vector<128x256xf32>, vector<8x256xf32> -> vector<8x256xf32>
    %414 = arith.addf %411, %413 : vector<8x256xf32>
    %415 = vector.extract_strided_slice %414 {offsets = [0, 0], sizes = [8, 128], strides = [1, 1]} : vector<8x256xf32> to vector<8x128xf32>
    %416 = vector.extract_strided_slice %414 {offsets = [0, 128], sizes = [8, 128], strides = [1, 1]} : vector<8x256xf32> to vector<8x128xf32>
    %417 = arith.negf %415 : vector<8x128xf32>
    %418 = math.exp %417 : vector<8x128xf32>
    %cst_146 = arith.constant 1.000000e+00 : f32
    %419 = vector.broadcast %cst_146 : f32 to vector<8x128xf32>
    %420 = arith.addf %419, %418 : vector<8x128xf32>
    %421 = arith.divf %419, %420 : vector<8x128xf32>
    %cst_147 = arith.constant 2.000000e+00 : f32
    %422 = vector.broadcast %cst_147 : f32 to vector<8x128xf32>
    %423 = arith.mulf %422, %416 : vector<8x128xf32>
    %424 = arith.select %9, %423, %416 : vector<8x128xi1>, vector<8x128xf32>
    %425 = arith.negf %424 : vector<8x128xf32>
    %426 = math.exp %425 : vector<8x128xf32>
    %cst_148 = arith.constant 1.000000e+00 : f32
    %427 = vector.broadcast %cst_148 : f32 to vector<8x128xf32>
    %428 = arith.addf %427, %426 : vector<8x128xf32>
    %429 = arith.divf %427, %428 : vector<8x128xf32>
    %cst_149 = arith.constant 2.000000e+00 : f32
    %430 = vector.broadcast %cst_149 : f32 to vector<8x128xf32>
    %431 = arith.mulf %430, %429 : vector<8x128xf32>
    %cst_150 = arith.constant 1.000000e+00 : f32
    %432 = vector.broadcast %cst_150 : f32 to vector<8x128xf32>
    %433 = arith.subf %431, %432 : vector<8x128xf32>
    %434 = arith.select %9, %433, %429 : vector<8x128xi1>, vector<8x128xf32>
    %435 = arith.select %9, %434, %405 : vector<8x128xi1>, vector<8x128xf32>
    %436 = arith.mulf %421, %435 : vector<8x128xf32>
    %c64_i32_151 = arith.constant 64 : i32
    %437 = tpu.dynamic_rotate %436 by %c64_i32_151 dim 1 : vector<8x128xf32>, i32 -> vector<8x128xf32>
    %438 = arith.addf %436, %437 : vector<8x128xf32>
    %439 = math.tanh %438 : vector<8x128xf32>
    %440 = arith.mulf %434, %439 : vector<8x128xf32>
    %c13_i32 = arith.constant 13 : i32
    %c8_i32_152 = arith.constant 8 : i32
    %441 = arith.muli %c13_i32, %c8_i32_152 : i32
    %442 = tpu.assume_multiple %441, 8 : i32
    %443 = arith.index_cast %442 : i32 to index
    %c0_153 = arith.constant 0 : index
    %444 = vector.load %arg8[%443, %c0_153] : memref<128x256xf32, #tpu.memory_space<vmem>>, vector<8x256xf32>
    %c0_154 = arith.constant 0 : index
    %c0_155 = arith.constant 0 : index
    %445 = vector.load %arg4[%c0_154, %c0_155] : memref<128x256xf32, #tpu.memory_space<vmem>>, vector<128x256xf32>
    %cst_156 = arith.constant dense<0.000000e+00> : vector<8x256xf32>
    %446 = tpu.matmul %440, %445, %cst_156 {dimension_numbers = #tpu.dot_dimension_numbers<[1], [0], [0], [1], [0, 0, 1, 1], [], []>} : vector<8x128xf32>, vector<128x256xf32>, vector<8x256xf32> -> vector<8x256xf32>
    %447 = arith.addf %444, %446 : vector<8x256xf32>
    %448 = vector.extract_strided_slice %447 {offsets = [0, 0], sizes = [8, 128], strides = [1, 1]} : vector<8x256xf32> to vector<8x128xf32>
    %449 = vector.extract_strided_slice %447 {offsets = [0, 128], sizes = [8, 128], strides = [1, 1]} : vector<8x256xf32> to vector<8x128xf32>
    %450 = arith.negf %448 : vector<8x128xf32>
    %451 = math.exp %450 : vector<8x128xf32>
    %cst_157 = arith.constant 1.000000e+00 : f32
    %452 = vector.broadcast %cst_157 : f32 to vector<8x128xf32>
    %453 = arith.addf %452, %451 : vector<8x128xf32>
    %454 = arith.divf %452, %453 : vector<8x128xf32>
    %cst_158 = arith.constant 2.000000e+00 : f32
    %455 = vector.broadcast %cst_158 : f32 to vector<8x128xf32>
    %456 = arith.mulf %455, %449 : vector<8x128xf32>
    %457 = arith.select %9, %456, %449 : vector<8x128xi1>, vector<8x128xf32>
    %458 = arith.negf %457 : vector<8x128xf32>
    %459 = math.exp %458 : vector<8x128xf32>
    %cst_159 = arith.constant 1.000000e+00 : f32
    %460 = vector.broadcast %cst_159 : f32 to vector<8x128xf32>
    %461 = arith.addf %460, %459 : vector<8x128xf32>
    %462 = arith.divf %460, %461 : vector<8x128xf32>
    %cst_160 = arith.constant 2.000000e+00 : f32
    %463 = vector.broadcast %cst_160 : f32 to vector<8x128xf32>
    %464 = arith.mulf %463, %462 : vector<8x128xf32>
    %cst_161 = arith.constant 1.000000e+00 : f32
    %465 = vector.broadcast %cst_161 : f32 to vector<8x128xf32>
    %466 = arith.subf %464, %465 : vector<8x128xf32>
    %467 = arith.select %9, %466, %462 : vector<8x128xi1>, vector<8x128xf32>
    %468 = arith.select %9, %467, %438 : vector<8x128xi1>, vector<8x128xf32>
    %469 = arith.mulf %454, %468 : vector<8x128xf32>
    %c64_i32_162 = arith.constant 64 : i32
    %470 = tpu.dynamic_rotate %469 by %c64_i32_162 dim 1 : vector<8x128xf32>, i32 -> vector<8x128xf32>
    %471 = arith.addf %469, %470 : vector<8x128xf32>
    %472 = math.tanh %471 : vector<8x128xf32>
    %473 = arith.mulf %467, %472 : vector<8x128xf32>
    %c14_i32 = arith.constant 14 : i32
    %c8_i32_163 = arith.constant 8 : i32
    %474 = arith.muli %c14_i32, %c8_i32_163 : i32
    %475 = tpu.assume_multiple %474, 8 : i32
    %476 = arith.index_cast %475 : i32 to index
    %c0_164 = arith.constant 0 : index
    %477 = vector.load %arg8[%476, %c0_164] : memref<128x256xf32, #tpu.memory_space<vmem>>, vector<8x256xf32>
    %c0_165 = arith.constant 0 : index
    %c0_166 = arith.constant 0 : index
    %478 = vector.load %arg4[%c0_165, %c0_166] : memref<128x256xf32, #tpu.memory_space<vmem>>, vector<128x256xf32>
    %cst_167 = arith.constant dense<0.000000e+00> : vector<8x256xf32>
    %479 = tpu.matmul %473, %478, %cst_167 {dimension_numbers = #tpu.dot_dimension_numbers<[1], [0], [0], [1], [0, 0, 1, 1], [], []>} : vector<8x128xf32>, vector<128x256xf32>, vector<8x256xf32> -> vector<8x256xf32>
    %480 = arith.addf %477, %479 : vector<8x256xf32>
    %481 = vector.extract_strided_slice %480 {offsets = [0, 0], sizes = [8, 128], strides = [1, 1]} : vector<8x256xf32> to vector<8x128xf32>
    %482 = vector.extract_strided_slice %480 {offsets = [0, 128], sizes = [8, 128], strides = [1, 1]} : vector<8x256xf32> to vector<8x128xf32>
    %483 = arith.negf %481 : vector<8x128xf32>
    %484 = math.exp %483 : vector<8x128xf32>
    %cst_168 = arith.constant 1.000000e+00 : f32
    %485 = vector.broadcast %cst_168 : f32 to vector<8x128xf32>
    %486 = arith.addf %485, %484 : vector<8x128xf32>
    %487 = arith.divf %485, %486 : vector<8x128xf32>
    %cst_169 = arith.constant 2.000000e+00 : f32
    %488 = vector.broadcast %cst_169 : f32 to vector<8x128xf32>
    %489 = arith.mulf %488, %482 : vector<8x128xf32>
    %490 = arith.select %9, %489, %482 : vector<8x128xi1>, vector<8x128xf32>
    %491 = arith.negf %490 : vector<8x128xf32>
    %492 = math.exp %491 : vector<8x128xf32>
    %cst_170 = arith.constant 1.000000e+00 : f32
    %493 = vector.broadcast %cst_170 : f32 to vector<8x128xf32>
    %494 = arith.addf %493, %492 : vector<8x128xf32>
    %495 = arith.divf %493, %494 : vector<8x128xf32>
    %cst_171 = arith.constant 2.000000e+00 : f32
    %496 = vector.broadcast %cst_171 : f32 to vector<8x128xf32>
    %497 = arith.mulf %496, %495 : vector<8x128xf32>
    %cst_172 = arith.constant 1.000000e+00 : f32
    %498 = vector.broadcast %cst_172 : f32 to vector<8x128xf32>
    %499 = arith.subf %497, %498 : vector<8x128xf32>
    %500 = arith.select %9, %499, %495 : vector<8x128xi1>, vector<8x128xf32>
    %501 = arith.select %9, %500, %471 : vector<8x128xi1>, vector<8x128xf32>
    %502 = arith.mulf %487, %501 : vector<8x128xf32>
    %c64_i32_173 = arith.constant 64 : i32
    %503 = tpu.dynamic_rotate %502 by %c64_i32_173 dim 1 : vector<8x128xf32>, i32 -> vector<8x128xf32>
    %504 = arith.addf %502, %503 : vector<8x128xf32>
    %505 = math.tanh %504 : vector<8x128xf32>
    %506 = arith.mulf %500, %505 : vector<8x128xf32>
    %c15_i32 = arith.constant 15 : i32
    %c8_i32_174 = arith.constant 8 : i32
    %507 = arith.muli %c15_i32, %c8_i32_174 : i32
    %508 = tpu.assume_multiple %507, 8 : i32
    %509 = arith.index_cast %508 : i32 to index
    %c0_175 = arith.constant 0 : index
    %510 = vector.load %arg8[%509, %c0_175] : memref<128x256xf32, #tpu.memory_space<vmem>>, vector<8x256xf32>
    %c0_176 = arith.constant 0 : index
    %c0_177 = arith.constant 0 : index
    %511 = vector.load %arg4[%c0_176, %c0_177] : memref<128x256xf32, #tpu.memory_space<vmem>>, vector<128x256xf32>
    %cst_178 = arith.constant dense<0.000000e+00> : vector<8x256xf32>
    %512 = tpu.matmul %506, %511, %cst_178 {dimension_numbers = #tpu.dot_dimension_numbers<[1], [0], [0], [1], [0, 0, 1, 1], [], []>} : vector<8x128xf32>, vector<128x256xf32>, vector<8x256xf32> -> vector<8x256xf32>
    %513 = arith.addf %510, %512 : vector<8x256xf32>
    %514 = vector.extract_strided_slice %513 {offsets = [0, 0], sizes = [8, 128], strides = [1, 1]} : vector<8x256xf32> to vector<8x128xf32>
    %515 = vector.extract_strided_slice %513 {offsets = [0, 128], sizes = [8, 128], strides = [1, 1]} : vector<8x256xf32> to vector<8x128xf32>
    %516 = arith.negf %514 : vector<8x128xf32>
    %517 = math.exp %516 : vector<8x128xf32>
    %cst_179 = arith.constant 1.000000e+00 : f32
    %518 = vector.broadcast %cst_179 : f32 to vector<8x128xf32>
    %519 = arith.addf %518, %517 : vector<8x128xf32>
    %520 = arith.divf %518, %519 : vector<8x128xf32>
    %cst_180 = arith.constant 2.000000e+00 : f32
    %521 = vector.broadcast %cst_180 : f32 to vector<8x128xf32>
    %522 = arith.mulf %521, %515 : vector<8x128xf32>
    %523 = arith.select %9, %522, %515 : vector<8x128xi1>, vector<8x128xf32>
    %524 = arith.negf %523 : vector<8x128xf32>
    %525 = math.exp %524 : vector<8x128xf32>
    %cst_181 = arith.constant 1.000000e+00 : f32
    %526 = vector.broadcast %cst_181 : f32 to vector<8x128xf32>
    %527 = arith.addf %526, %525 : vector<8x128xf32>
    %528 = arith.divf %526, %527 : vector<8x128xf32>
    %cst_182 = arith.constant 2.000000e+00 : f32
    %529 = vector.broadcast %cst_182 : f32 to vector<8x128xf32>
    %530 = arith.mulf %529, %528 : vector<8x128xf32>
    %cst_183 = arith.constant 1.000000e+00 : f32
    %531 = vector.broadcast %cst_183 : f32 to vector<8x128xf32>
    %532 = arith.subf %530, %531 : vector<8x128xf32>
    %533 = arith.select %9, %532, %528 : vector<8x128xi1>, vector<8x128xf32>
    %534 = arith.select %9, %533, %504 : vector<8x128xi1>, vector<8x128xf32>
    %535 = arith.mulf %520, %534 : vector<8x128xf32>
    %c64_i32_184 = arith.constant 64 : i32
    %536 = tpu.dynamic_rotate %535 by %c64_i32_184 dim 1 : vector<8x128xf32>, i32 -> vector<8x128xf32>
    %537 = arith.addf %535, %536 : vector<8x128xf32>
    %538 = math.tanh %537 : vector<8x128xf32>
    %539 = arith.mulf %533, %538 : vector<8x128xf32>
    %c16_i32 = arith.constant 16 : i32
    %c0_185 = arith.constant 0 : index
    %c0_186 = arith.constant 0 : index
    %540 = vector.load %arg5[%c0_185, %c0_186] : memref<128x128xf32, #tpu.memory_space<vmem>>, vector<128x128xf32>
    %cst_187 = arith.constant dense<0.000000e+00> : vector<8x128xf32>
    %541 = tpu.matmul %539, %540, %cst_187 {dimension_numbers = #tpu.dot_dimension_numbers<[1], [0], [0], [1], [0, 0, 1, 1], [], []>} : vector<8x128xf32>, vector<128x128xf32>, vector<8x128xf32> -> vector<8x128xf32>
    %c0_188 = arith.constant 0 : index
    %c0_189 = arith.constant 0 : index
    %542 = vector.load %arg6[%c0_188, %c0_189] : memref<1x128xf32, #tpu.memory_space<vmem>>, vector<1x128xf32>
    %543 = vector.broadcast %542 : vector<1x128xf32> to vector<8x128xf32>
    %544 = arith.addf %541, %543 : vector<8x128xf32>
    %c0_190 = arith.constant 0 : index
    %c0_191 = arith.constant 0 : index
    %545 = vector.load %arg7[%c0_190, %c0_191] : memref<8x128xf32, #tpu.memory_space<vmem>>, vector<8x128xf32>
    tpu.vector_store %arg7[%c0_190, %c0_191], %544 {strides = array<i32>} : memref<8x128xf32, #tpu.memory_space<vmem>>, vector<8x128xf32>,
    return
  }
  func.func @transform_0(%arg0: i32) -> (i32, i32) {
    %c0_i32 = arith.constant 0 : i32
    %c0_i32_0 = arith.constant 0 : i32
    %c0_i32_1 = arith.constant 0 : i32
    return %c0_i32, %c0_i32_0 : i32, i32
  }
  func.func @transform_1(%arg0: i32) -> (i32, i32) {
    %c0_i32 = arith.constant 0 : i32
    %c0_i32_0 = arith.constant 0 : i32
    %c0_i32_1 = arith.constant 0 : i32
    return %c0_i32, %c0_i32_0 : i32, i32
  }
  func.func @transform_2(%arg0: i32) -> (i32, i32) {
    %c0_i32 = arith.constant 0 : i32
    %c0_i32_0 = arith.constant 0 : i32
    %c0_i32_1 = arith.constant 0 : i32
    return %c0_i32, %c0_i32_0 : i32, i32
  }
  func.func @transform_3(%arg0: i32) -> (i32, i32) {
    %c0_i32 = arith.constant 0 : i32
    %c0_i32_0 = arith.constant 0 : i32
    %c0_i32_1 = arith.constant 0 : i32
    return %c0_i32, %c0_i32_0 : i32, i32
  }
  func.func @transform_4(%arg0: i32) -> (i32, i32) {
    %c0_i32 = arith.constant 0 : i32
    %c0_i32_0 = arith.constant 0 : i32
    %c0_i32_1 = arith.constant 0 : i32
    return %c0_i32, %c0_i32_0 : i32, i32
  }
  func.func @transform_5(%arg0: i32) -> (i32, i32) {
    %c0_i32 = arith.constant 0 : i32
    %c0_i32_0 = arith.constant 0 : i32
    %c0_i32_1 = arith.constant 0 : i32
    return %c0_i32, %c0_i32_0 : i32, i32
  }
  func.func @transform_6(%arg0: i32) -> (i32, i32) {
    %c0_i32 = arith.constant 0 : i32
    %c0_i32_0 = arith.constant 0 : i32
    %c0_i32_1 = arith.constant 0 : i32
    return %c0_i32, %c0_i32_0 : i32, i32
  }
}

</mosaic_0001>

<llo_original>
// kernel: cnn_lstm_forward.1
$region0: #{cnn_lstm_forward.1}
  #allocation0 [shape = 'u32[]', space=smem, size = 0x4, offset = 0x4, fixed_abs, tag = 'smem constant byte address 0x4 - core index']
  #allocation1 [shape = 'u32[72,128]{1,0:T(1,128)}', space=vmem, size = 0x9000, scoped, tag = 'internal scratch']
  #allocation2 [shape = 'f32[128,256]{1,0:T(8,128)}', space=vmem, size = 0x20000, scoped, tag = 'scratch operand']
  %s0 = inlined_call_operand.vmem [shape: f32[128,3], index: 0, kind: input, shape index: {}]
  %s1 = inlined_call_operand.vmem [shape: f32[3,256], index: 1, kind: input, shape index: {}]
  %s2 = inlined_call_operand.vmem [shape: f32[1,256], index: 2, kind: input, shape index: {}]
  %s3 = inlined_call_operand.vmem [shape: f32[128,256], index: 3, kind: input, shape index: {}]
  %s4 = inlined_call_operand.hbm [shape: f32[128,128], index: 4, kind: input, shape index: {}]
  %s5 = inlined_call_operand.vmem [shape: f32[1,128], index: 5, kind: input, shape index: {}]
  %s6 = inlined_call_operand.vmem [shape: f32[8,128], index: 6, kind: output, shape index: {}]
  %s7 = sld [smem:[#allocation0]]
  $region38: #{cnn_lstm_forward.1} parent=0
    _
  %s9 = ssub.s32 1, %s7
  %s10 = scalar_select 0, %s9, %s7
  $region1: #{cnn_lstm_forward.1} parent=0
    #allocation3 [shape = 'u8[65536]{0}', space=vmem, size = 0x10000, scoped, tag = 'input window, operand 4, single buffered']
    #allocation4 [shape = 's32[1]{0}', space=sflag, size = 0x4, scoped, tag = 'scoped memory for cnn_lstm_forward.1']
    %11 = vsyncpa [#allocation4], 0
    // Predicated region
    $region2: #{cnn_lstm_forward.1} parent=1 // pred_check
      _
    $region3: #{cnn_lstm_forward.1} parent=1 // pred_check_branch
      %13 = sbr.rel (0) target = $region5
    $region4: #{cnn_lstm_forward.1} parent=1 // pred_region
      _
    $region5: #{cnn_lstm_forward.1} parent=1 // pred_fallthru
      _
    // Predicated region
    $region6: #{cnn_lstm_forward.1} parent=1 // pred_check
      _
    $region7: #{cnn_lstm_forward.1} parent=1 // pred_check_branch
      %15 = sbr.rel (0) target = $region9
    $region8: #{cnn_lstm_forward.1} parent=1 // pred_region
      _
    $region9: #{cnn_lstm_forward.1} parent=1 // pred_fallthru
      _
    // Predicated region
    $region10: #{cnn_lstm_forward.1} parent=1 // pred_check
      _
    $region11: #{cnn_lstm_forward.1} parent=1 // pred_check_branch
      %17 = sbr.rel (0) target = $region13
    $region12: #{cnn_lstm_forward.1} parent=1 // pred_region
      _
    $region13: #{cnn_lstm_forward.1} parent=1 // pred_fallthru
      _
    // Predicated region
    $region14: #{cnn_lstm_forward.1} parent=1 // pred_check
      _
    $region15: #{cnn_lstm_forward.1} parent=1 // pred_check_branch
      %19 = sbr.rel (0) target = $region17
    $region16: #{cnn_lstm_forward.1} parent=1 // pred_region
      _
    $region17: #{cnn_lstm_forward.1} parent=1 // pred_fallthru
      _
    // Predicated region
    $region18: #{cnn_lstm_forward.1} parent=1 // pred_check
      _
    $region19: #{cnn_lstm_forward.1} parent=1 // pred_check_branch
      %21 = sbr.rel (0) target = $region21
    $region20: #{cnn_lstm_forward.1} parent=1 // pred_region
      %23 = vsyncadd [#allocation4], 0
      %s24 = sshll.u32 %s4, 4
      %s25 = int_to_ptr.hbm [resolvable:$true] %s24
      %s26 = sshll.u32 [#allocation3], 4
      %s27 = int_to_ptr.vmem [resolvable:$true] %s26
      %32 = dma.hbm_to_vmem [thread:$0]  %s25, 2048, %s27, [#allocation4], 128, 128, 8
    $region21: #{cnn_lstm_forward.1} parent=1 // pred_fallthru
      _
    // Predicated region
    $region22: #{cnn_lstm_forward.1} parent=1 // pred_check
      _
    $region23: #{cnn_lstm_forward.1} parent=1 // pred_check_branch
      %34 = sbr.rel (0) target = $region25
    $region24: #{cnn_lstm_forward.1} parent=1 // pred_region
      _
    $region25: #{cnn_lstm_forward.1} parent=1 // pred_fallthru
      _
    // Predicated region
    $region26: #{cnn_lstm_forward.1} parent=1 // pred_check
      _
    $region27: #{cnn_lstm_forward.1} parent=1 // pred_check_branch
      %36 = sbr.rel (0) target = $region29
    $region28: #{cnn_lstm_forward.1} parent=1 // pred_region
      %38 = dma.done [#allocation4], 2048
    $region29: #{cnn_lstm_forward.1} parent=1 // pred_fallthru
      _
    %v39 = vld [vmem:[%s0] sm:$0xff]
    %v40 = vld [vmem:[%s0 + $0x8] sm:$0xff]
    %v41 = vld [vmem:[%s0 + $0x10] sm:$0xff]
    %v42 = vld [vmem:[%s0 + $0x18] sm:$0xff]
    %v43 = vld [vmem:[%s0 + $0x20] sm:$0xff]
    %v44 = vld [vmem:[%s0 + $0x28] sm:$0xff]
    %v45 = vld [vmem:[%s0 + $0x30] sm:$0xff]
    %v46 = vld [vmem:[%s0 + $0x38] sm:$0xff]
    %v47 = vld [vmem:[%s0 + $0x40] sm:$0xff]
    %v48 = vld [vmem:[%s0 + $0x48] sm:$0xff]
    %v49 = vld [vmem:[%s0 + $0x50] sm:$0xff]
    %v50 = vld [vmem:[%s0 + $0x58] sm:$0xff]
    %v51 = vld [vmem:[%s0 + $0x60] sm:$0xff]
    %v52 = vld [vmem:[%s0 + $0x68] sm:$0xff]
    %v53 = vld [vmem:[%s0 + $0x70] sm:$0xff]
    %v54 = vld [vmem:[%s0 + $0x78] sm:$0xff]
    %v55 = vld [vmem:[%s1] sm:$0x77]
    %v56 = vld [vmem:[%s2] sm:$0x3]
    %v58 = vperm.slane %v56, 0
    %v59 = vperm.slane %v56, 1
    %63 = vst [vmem:[#allocation1] ss:$2 sm:$0xff] %v55
    %v64 = vld.sshfl [vmem:[#allocation1] sm:$0xff pattern:$0x75316420]
    %v65 = vld.sshfl [vmem:[#allocation1 + $0x8] sm:$0xff pattern:$0x75316420]
    %vm66 = vcmask 23552
    %v68 = vsel %vm66, %v39, 0
    %v71 = vsel %vm66, %v40, 0
    %v74 = vsel %vm66, %v41, 0
    %v77 = vsel %vm66, %v42, 0
    %v80 = vsel %vm66, %v43, 0
    %v83 = vsel %vm66, %v44, 0
    %v86 = vsel %vm66, %v45, 0
    %v89 = vsel %vm66, %v46, 0
    %v92 = vsel %vm66, %v47, 0
    %v95 = vsel %vm66, %v48, 0
    %v98 = vsel %vm66, %v49, 0
    %v101 = vsel %vm66, %v50, 0
    %v104 = vsel %vm66, %v51, 0
    %v107 = vsel %vm66, %v52, 0
    %v110 = vsel %vm66, %v53, 0
    %v113 = vsel %vm66, %v54, 0
    %vm115 = vcmask 1042432
    %v116 = vsel %vm115, %v64, 0
    %v118 = vsel %vm115, %v65, 0
    %120 = vmatpush.msra.mxu0 0.0
    %121 = vmatpush.msra.mxu0 0.0
    %122 = vmatpush.msra.mxu0 0.0
    %123 = vmatpush.msra.mxu0 0.0
    %124 = vmatpush.msra.mxu0 0.0
    %125 = vmatpush.msra.mxu0 0.0
    %126 = vmatpush.msra.mxu0 0.0
    %127 = vmatpush.msra.mxu0 0.0
    %128 = vmatpush.msra.mxu0 0.0
    %129 = vmatpush.msra.mxu0 0.0
    %130 = vmatpush.msra.mxu0 0.0
    %131 = vmatpush.msra.mxu0 0.0
    %132 = vmatpush.msra.mxu0 0.0
    %133 = vmatpush.msra.mxu0 0.0
    %134 = vmatpush.msra.mxu0 0.0
    %135 = vmatpush.msra.mxu0 %v116
    %136 = vmatmul.f32.gmra.mxu0 %v68
    %v137 = vpop.f32.mrf.mxu0
    %v138 = vadd.f32 %v58, %v137
    %139 = vmatmul.f32.gmra.mxu0 %v71
    %v140 = vpop.f32.mrf.mxu0
    %v141 = vadd.f32 %v58, %v140
    %142 = vmatmul.f32.gmra.mxu0 %v74
    %v143 = vpop.f32.mrf.mxu0
    %v144 = vadd.f32 %v58, %v143
    %145 = vmatmul.f32.gmra.mxu0 %v77
    %v146 = vpop.f32.mrf.mxu0
    %v147 = vadd.f32 %v58, %v146
    %148 = vmatmul.f32.gmra.mxu0 %v80
    %v149 = vpop.f32.mrf.mxu0
    %v150 = vadd.f32 %v58, %v149
    %151 = vmatmul.f32.gmra.mxu0 %v83
    %v152 = vpop.f32.mrf.mxu0
    %v153 = vadd.f32 %v58, %v152
    %154 = vmatmul.f32.gmra.mxu0 %v86
    %v155 = vpop.f32.mrf.mxu0
    %v156 = vadd.f32 %v58, %v155
    %157 = vmatmul.f32.gmra.mxu0 %v89
    %v158 = vpop.f32.mrf.mxu0
    %v159 = vadd.f32 %v58, %v158
    %160 = vmatmul.f32.gmra.mxu0 %v92
    %v161 = vpop.f32.mrf.mxu0
    %v162 = vadd.f32 %v58, %v161
    %163 = vmatmul.f32.gmra.mxu0 %v95
    %v164 = vpop.f32.mrf.mxu0
    %v165 = vadd.f32 %v58, %v164
    %166 = vmatmul.f32.gmra.mxu0 %v98
    %v167 = vpop.f32.mrf.mxu0
    %v168 = vadd.f32 %v58, %v167
    %169 = vmatmul.f32.gmra.mxu0 %v101
    %v170 = vpop.f32.mrf.mxu0
    %v171 = vadd.f32 %v58, %v170
    %172 = vmatmul.f32.gmra.mxu0 %v104
    %v173 = vpop.f32.mrf.mxu0
    %v174 = vadd.f32 %v58, %v173
    %175 = vmatmul.f32.gmra.mxu0 %v107
    %v176 = vpop.f32.mrf.mxu0
    %v177 = vadd.f32 %v58, %v176
    %178 = vmatmul.f32.gmra.mxu0 %v110
    %v179 = vpop.f32.mrf.mxu0
    %v180 = vadd.f32 %v58, %v179
    %181 = vmatmul.f32.gmra.mxu0 %v113
    %v182 = vpop.f32.mrf.mxu0
    %v183 = vadd.f32 %v58, %v182
    %184 = vdwg.mxu0
    %185 = vmatpush.msra.mxu0 0.0
    %186 = vmatpush.msra.mxu0 0.0
    %187 = vmatpush.msra.mxu0 0.0
    %188 = vmatpush.msra.mxu0 0.0
    %189 = vmatpush.msra.mxu0 0.0
    %190 = vmatpush.msra.mxu0 0.0
    %191 = vmatpush.msra.mxu0 0.0
    %192 = vmatpush.msra.mxu0 0.0
    %193 = vmatpush.msra.mxu0 0.0
    %194 = vmatpush.msra.mxu0 0.0
    %195 = vmatpush.msra.mxu0 0.0
    %196 = vmatpush.msra.mxu0 0.0
    %197 = vmatpush.msra.mxu0 0.0
    %198 = vmatpush.msra.mxu0 0.0
    %199 = vmatpush.msra.mxu0 0.0
    %200 = vmatpush.msra.mxu0 %v118
    %201 = vmatmul.f32.gmra.mxu0 %v68
    %v202 = vpop.f32.mrf.mxu0
    %v203 = vadd.f32 %v59, %v202
    %204 = vmatmul.f32.gmra.mxu0 %v71
    %v205 = vpop.f32.mrf.mxu0
    %v206 = vadd.f32 %v59, %v205
    %207 = vmatmul.f32.gmra.mxu0 %v74
    %v208 = vpop.f32.mrf.mxu0
    %v209 = vadd.f32 %v59, %v208
    %210 = vmatmul.f32.gmra.mxu0 %v77
    %v211 = vpop.f32.mrf.mxu0
    %v212 = vadd.f32 %v59, %v211
    %213 = vmatmul.f32.gmra.mxu0 %v80
    %v214 = vpop.f32.mrf.mxu0
    %v215 = vadd.f32 %v59, %v214
    %216 = vmatmul.f32.gmra.mxu0 %v83
    %v217 = vpop.f32.mrf.mxu0
    %v218 = vadd.f32 %v59, %v217
    %219 = vmatmul.f32.gmra.mxu0 %v86
    %v220 = vpop.f32.mrf.mxu0
    %v221 = vadd.f32 %v59, %v220
    %222 = vmatmul.f32.gmra.mxu0 %v89
    %v223 = vpop.f32.mrf.mxu0
    %v224 = vadd.f32 %v59, %v223
    %225 = vmatmul.f32.gmra.mxu0 %v92
    %v226 = vpop.f32.mrf.mxu0
    %v227 = vadd.f32 %v59, %v226
    %228 = vmatmul.f32.gmra.mxu0 %v95
    %v229 = vpop.f32.mrf.mxu0
    %v230 = vadd.f32 %v59, %v229
    %231 = vmatmul.f32.gmra.mxu0 %v98
    %v232 = vpop.f32.mrf.mxu0
    %v233 = vadd.f32 %v59, %v232
    %234 = vmatmul.f32.gmra.mxu0 %v101
    %v235 = vpop.f32.mrf.mxu0
    %v236 = vadd.f32 %v59, %v235
    %237 = vmatmul.f32.gmra.mxu0 %v104
    %v238 = vpop.f32.mrf.mxu0
    %v239 = vadd.f32 %v59, %v238
    %240 = vmatmul.f32.gmra.mxu0 %v107
    %v241 = vpop.f32.mrf.mxu0
    %v242 = vadd.f32 %v59, %v241
    %243 = vmatmul.f32.gmra.mxu0 %v110
    %v244 = vpop.f32.mrf.mxu0
    %v245 = vadd.f32 %v59, %v244
    %246 = vmatmul.f32.gmra.mxu0 %v113
    %v247 = vpop.f32.mrf.mxu0
    %v248 = vadd.f32 %v59, %v247
    %249 = vdwg.mxu0
    %250 = vst [vmem:[#allocation2] sm:$0xff] %v138
    %251 = vst [vmem:[#allocation2 + $0x8] sm:$0xff] %v203
    %252 = vst [vmem:[#allocation2 + $0x10] sm:$0xff] %v141
    %253 = vst [vmem:[#allocation2 + $0x18] sm:$0xff] %v206
    %254 = vst [vmem:[#allocation2 + $0x20] sm:$0xff] %v144
    %255 = vst [vmem:[#allocation2 + $0x28] sm:$0xff] %v209
    %256 = vst [vmem:[#allocation2 + $0x30] sm:$0xff] %v147
    %257 = vst [vmem:[#allocation2 + $0x38] sm:$0xff] %v212
    %258 = vst [vmem:[#allocation2 + $0x40] sm:$0xff] %v150
    %259 = vst [vmem:[#allocation2 + $0x48] sm:$0xff] %v215
    %260 = vst [vmem:[#allocation2 + $0x50] sm:$0xff] %v153
    %261 = vst [vmem:[#allocation2 + $0x58] sm:$0xff] %v218
    %262 = vst [vmem:[#allocation2 + $0x60] sm:$0xff] %v156
    %263 = vst [vmem:[#allocation2 + $0x68] sm:$0xff] %v221
    %264 = vst [vmem:[#allocation2 + $0x70] sm:$0xff] %v159
    %265 = vst [vmem:[#allocation2 + $0x78] sm:$0xff] %v224
    %266 = vst [vmem:[#allocation2 + $0x80] sm:$0xff] %v162
    %267 = vst [vmem:[#allocation2 + $0x88] sm:$0xff] %v227
    %268 = vst [vmem:[#allocation2 + $0x90] sm:$0xff] %v165
    %269 = vst [vmem:[#allocation2 + $0x98] sm:$0xff] %v230
    %270 = vst [vmem:[#allocation2 + $0xa0] sm:$0xff] %v168
    %271 = vst [vmem:[#allocation2 + $0xa8] sm:$0xff] %v233
    %272 = vst [vmem:[#allocation2 + $0xb0] sm:$0xff] %v171
    %273 = vst [vmem:[#allocation2 + $0xb8] sm:$0xff] %v236
    %274 = vst [vmem:[#allocation2 + $0xc0] sm:$0xff] %v174
    %275 = vst [vmem:[#allocation2 + $0xc8] sm:$0xff] %v239
    %276 = vst [vmem:[#allocation2 + $0xd0] sm:$0xff] %v177
    %277 = vst [vmem:[#allocation2 + $0xd8] sm:$0xff] %v242
    %278 = vst [vmem:[#allocation2 + $0xe0] sm:$0xff] %v180
    %279 = vst [vmem:[#allocation2 + $0xe8] sm:$0xff] %v245
    %280 = vst [vmem:[#allocation2 + $0xf0] sm:$0xff] %v183
    %281 = vst [vmem:[#allocation2 + $0xf8] sm:$0xff] %v248
    %v282 = vlaneseq
    %v283 = vand.u32 %v282, 127
    %vm284 = vcmp.lt.s32.totalorder %v283, 64
    %s285 = smul.u32 0, 2
    %s286 = smul.addr %s285, 8
    %s287 = scalar_lea.vmem [#allocation2], %s286
    %v288 = vld [vmem:[%s287] sm:$0xff]
    %v289 = vld [vmem:[%s287 + $0x8] sm:$0xff]
    %v290 = vld [vmem:[%s3] sm:$0xff]
    %v291 = vld [vmem:[%s3 + $0x8] sm:$0xff]
    %v292 = vld [vmem:[%s3 + $0x10] sm:$0xff]
    %v293 = vld [vmem:[%s3 + $0x18] sm:$0xff]
    %v294 = vld [vmem:[%s3 + $0x20] sm:$0xff]
    %v295 = vld [vmem:[%s3 + $0x28] sm:$0xff]
    %v296 = vld [vmem:[%s3 + $0x30] sm:$0xff]
    %v297 = vld [vmem:[%s3 + $0x38] sm:$0xff]
    %v298 = vld [vmem:[%s3 + $0x40] sm:$0xff]
    %v299 = vld [vmem:[%s3 + $0x48] sm:$0xff]
    %v300 = vld [vmem:[%s3 + $0x50] sm:$0xff]
    %v301 = vld [vmem:[%s3 + $0x58] sm:$0xff]
    %v302 = vld [vmem:[%s3 + $0x60] sm:$0xff]
    %v303 = vld [vmem:[%s3 + $0x68] sm:$0xff]
    %v304 = vld [vmem:[%s3 + $0x70] sm:$0xff]
    %v305 = vld [vmem:[%s3 + $0x78] sm:$0xff]
    %v306 = vld [vmem:[%s3 + $0x80] sm:$0xff]
    %v307 = vld [vmem:[%s3 + $0x88] sm:$0xff]
    %v308 = vld [vmem:[%s3 + $0x90] sm:$0xff]
    %v309 = vld [vmem:[%s3 + $0x98] sm:$0xff]
    %v310 = vld [vmem:[%s3 + $0xa0] sm:$0xff]
    %v311 = vld [vmem:[%s3 + $0xa8] sm:$0xff]
    %v312 = vld [vmem:[%s3 + $0xb0] sm:$0xff]
    %v313 = vld [vmem:[%s3 + $0xb8] sm:$0xff]
    %v314 = vld [vmem:[%s3 + $0xc0] sm:$0xff]
    %v315 = vld [vmem:[%s3 + $0xc8] sm:$0xff]
    %v316 = vld [vmem:[%s3 + $0xd0] sm:$0xff]
    %v317 = vld [vmem:[%s3 + $0xd8] sm:$0xff]
    %v318 = vld [vmem:[%s3 + $0xe0] sm:$0xff]
    %v319 = vld [vmem:[%s3 + $0xe8] sm:$0xff]
    %v320 = vld [vmem:[%s3 + $0xf0] sm:$0xff]
    %v321 = vld [vmem:[%s3 + $0xf8] sm:$0xff]
    %322 = vmatpush.msra.mxu0 %v320
    %323 = vmatpush.msra.mxu0 %v318
    %324 = vmatpush.msra.mxu0 %v316
    %325 = vmatpush.msra.mxu0 %v314
    %326 = vmatpush.msra.mxu0 %v312
    %327 = vmatpush.msra.mxu0 %v310
    %328 = vmatpush.msra.mxu0 %v308
    %329 = vmatpush.msra.mxu0 %v306
    %330 = vmatpush.msra.mxu0 %v304
    %331 = vmatpush.msra.mxu0 %v302
    %332 = vmatpush.msra.mxu0 %v300
    %333 = vmatpush.msra.mxu0 %v298
    %334 = vmatpush.msra.mxu0 %v296
    %335 = vmatpush.msra.mxu0 %v294
    %336 = vmatpush.msra.mxu0 %v292
    %337 = vmatpush.msra.mxu0 %v290
    %338 = vmatmul.f32.gmra.mxu0 0.0
    %v339 = vpop.f32.mrf.mxu0
    %v340 = vadd.f32 0.0, %v339
    %341 = vdwg.mxu0
    %342 = vmatpush.msra.mxu0 %v321
    %343 = vmatpush.msra.mxu0 %v319
    %344 = vmatpush.msra.mxu0 %v317
    %345 = vmatpush.msra.mxu0 %v315
    %346 = vmatpush.msra.mxu0 %v313
    %347 = vmatpush.msra.mxu0 %v311
    %348 = vmatpush.msra.mxu0 %v309
    %349 = vmatpush.msra.mxu0 %v307
    %350 = vmatpush.msra.mxu0 %v305
    %351 = vmatpush.msra.mxu0 %v303
    %352 = vmatpush.msra.mxu0 %v301
    %353 = vmatpush.msra.mxu0 %v299
    %354 = vmatpush.msra.mxu0 %v297
    %355 = vmatpush.msra.mxu0 %v295
    %356 = vmatpush.msra.mxu0 %v293
    %357 = vmatpush.msra.mxu0 %v291
    %358 = vmatmul.f32.gmra.mxu0 0.0
    %v359 = vpop.f32.mrf.mxu0
    %v360 = vadd.f32 0.0, %v359
    %361 = vdwg.mxu0
    %v362 = vadd.f32 %v288, %v340
    %v363 = vadd.f32 %v289, %v360
    %v364 = vxor.u32 %v362, 2147483648
    %v365 = vmul.f32 %v364, 1.442695
    %v366 = vpow.pop %v365
    %v367 = vadd.f32 %v366, 1.0
    %v368 = vrcp.pop %v367
    %v369 = vmul.f32 %v367, %v368
    %v370 = vsub.f32 1.0, %v369
    %v371 = vmul.f32 %v368, %v370
    %v372 = vadd.f32 %v368, %v371
    %vm373 = vweird.f32 %v367
    %vm374 = vweird.f32 %v368
    %vm375 = vmor %vm373, %vm374
    %v376 = vsel %vm375, %v368, %v372
    %v377 = vand.u32 2147483647, %v367
    %vm378 = vcmp.eq.f32.partialorder %v377, 8.507059e+37
    %v379 = vand.u32 %v367, 2147483648
    %v380 = vor.u32 1.1754944e-38, %v379
    %v381 = vsel %vm378, %v380, %v376
    %v382 = vmul.f32 1.0, %v381
    %v383 = vmul.f32 %v363, 2.0
    %v384 = vsel %vm284, %v383, %v363
    %v385 = vxor.u32 %v384, 2147483648
    %v386 = vmul.f32 %v385, 1.442695
    %v387 = vpow.pop %v386
    %v388 = vadd.f32 %v387, 1.0
    %v389 = vrcp.pop %v388
    %v390 = vmul.f32 %v388, %v389
    %v391 = vsub.f32 1.0, %v390
    %v392 = vmul.f32 %v389, %v391
    %v393 = vadd.f32 %v389, %v392
    %vm394 = vweird.f32 %v388
    %vm395 = vweird.f32 %v389
    %vm396 = vmor %vm394, %vm395
    %v397 = vsel %vm396, %v389, %v393
    %v398 = vand.u32 2147483647, %v388
    %vm399 = vcmp.eq.f32.partialorder %v398, 8.507059e+37
    %v400 = vand.u32 %v388, 2147483648
    %v401 = vor.u32 1.1754944e-38, %v400
    %v402 = vsel %vm399, %v401, %v397
    %v403 = vmul.f32 1.0, %v402
    %v404 = vmul.f32 %v403, 2.0
    %v405 = vsub.f32 %v404, 1.0
    %v406 = vsel %vm284, %v405, %v403
    %v407 = vsel %vm284, %v405, 0.0
    %v408 = vmul.f32 %v382, %v407
    %409 = vrot.lane.b32.xlu0 %v408, 64
    %v410 = vpop.permute.xlu0 %409
    %v411 = vadd.f32 %v408, %v410
    %v412 = vtanh.pop %v411
    %v413 = vmul.f32 %v406, %v412
    %s414 = smul.u32 1, 2
    %s415 = smul.addr %s414, 8
    %s416 = scalar_lea.vmem [#allocation2], %s415
    %v417 = vld [vmem:[%s416] sm:$0xff]
    %v418 = vld [vmem:[%s416 + $0x8] sm:$0xff]
    %419 = vmatpush.msra.mxu0 %v320
    %420 = vmatpush.msra.mxu0 %v318
    %421 = vmatpush.msra.mxu0 %v316
    %422 = vmatpush.msra.mxu0 %v314
    %423 = vmatpush.msra.mxu0 %v312
    %424 = vmatpush.msra.mxu0 %v310
    %425 = vmatpush.msra.mxu0 %v308
    %426 = vmatpush.msra.mxu0 %v306
    %427 = vmatpush.msra.mxu0 %v304
    %428 = vmatpush.msra.mxu0 %v302
    %429 = vmatpush.msra.mxu0 %v300
    %430 = vmatpush.msra.mxu0 %v298
    %431 = vmatpush.msra.mxu0 %v296
    %432 = vmatpush.msra.mxu0 %v294
    %433 = vmatpush.msra.mxu0 %v292
    %434 = vmatpush.msra.mxu0 %v290
    %435 = vmatmul.f32.gmra.mxu0 %v413
    %v436 = vpop.f32.mrf.mxu0
    %v437 = vadd.f32 0.0, %v436
    %438 = vdwg.mxu0
    %439 = vmatpush.msra.mxu0 %v321
    %440 = vmatpush.msra.mxu0 %v319
    %441 = vmatpush.msra.mxu0 %v317
    %442 = vmatpush.msra.mxu0 %v315
    %443 = vmatpush.msra.mxu0 %v313
    %444 = vmatpush.msra.mxu0 %v311
    %445 = vmatpush.msra.mxu0 %v309
    %446 = vmatpush.msra.mxu0 %v307
    %447 = vmatpush.msra.mxu0 %v305
    %448 = vmatpush.msra.mxu0 %v303
    %449 = vmatpush.msra.mxu0 %v301
    %450 = vmatpush.msra.mxu0 %v299
    %451 = vmatpush.msra.mxu0 %v297
    %452 = vmatpush.msra.mxu0 %v295
    %453 = vmatpush.msra.mxu0 %v293
    %454 = vmatpush.msra.mxu0 %v291
    %455 = vmatmul.f32.gmra.mxu0 %v413
    %v456 = vpop.f32.mrf.mxu0
    %v457 = vadd.f32 0.0, %v456
    %458 = vdwg.mxu0
    %v459 = vadd.f32 %v417, %v437
    %v460 = vadd.f32 %v418, %v457
    %v461 = vxor.u32 %v459, 2147483648
    %v462 = vmul.f32 %v461, 1.442695
    %v463 = vpow.pop %v462
    %v464 = vadd.f32 %v463, 1.0
    %v465 = vrcp.pop %v464
    %v466 = vmul.f32 %v464, %v465
    %v467 = vsub.f32 1.0, %v466
    %v468 = vmul.f32 %v465, %v467
    %v469 = vadd.f32 %v465, %v468
    %vm470 = vweird.f32 %v464
    %vm471 = vweird.f32 %v465
    %vm472 = vmor %vm470, %vm471
    %v473 = vsel %vm472, %v465, %v469
    %v474 = vand.u32 2147483647, %v464
    %vm475 = vcmp.eq.f32.partialorder %v474, 8.507059e+37
    %v476 = vand.u32 %v464, 2147483648
    %v477 = vor.u32 1.1754944e-38, %v476
    %v478 = vsel %vm475, %v477, %v473
    %v479 = vmul.f32 1.0, %v478
    %v480 = vmul.f32 %v460, 2.0
    %v481 = vsel %vm284, %v480, %v460
    %v482 = vxor.u32 %v481, 2147483648
    %v483 = vmul.f32 %v482, 1.442695
    %v484 = vpow.pop %v483
    %v485 = vadd.f32 %v484, 1.0
    %v486 = vrcp.pop %v485
    %v487 = vmul.f32 %v485, %v486
    %v488 = vsub.f32 1.0, %v487
    %v489 = vmul.f32 %v486, %v488
    %v490 = vadd.f32 %v486, %v489
    %vm491 = vweird.f32 %v485
    %vm492 = vweird.f32 %v486
    %vm493 = vmor %vm491, %vm492
    %v494 = vsel %vm493, %v486, %v490
    %v495 = vand.u32 2147483647, %v485
    %vm496 = vcmp.eq.f32.partialorder %v495, 8.507059e+37
    %v497 = vand.u32 %v485, 2147483648
    %v498 = vor.u32 1.1754944e-38, %v497
    %v499 = vsel %vm496, %v498, %v494
    %v500 = vmul.f32 1.0, %v499
    %v501 = vmul.f32 %v500, 2.0
    %v502 = vsub.f32 %v501, 1.0
    %v503 = vsel %vm284, %v502, %v500
    %v504 = vsel %vm284, %v502, %v411
    %v505 = vmul.f32 %v479, %v504
    %506 = vrot.lane.b32.xlu0 %v505, 64
    %v507 = vpop.permute.xlu0 %506
    %v508 = vadd.f32 %v505, %v507
    %v509 = vtanh.pop %v508
    %v510 = vmul.f32 %v503, %v509
    %s511 = smul.u32 2, 2
    %s512 = smul.addr %s511, 8
    %s513 = scalar_lea.vmem [#allocation2], %s512
    %v514 = vld [vmem:[%s513] sm:$0xff]
    %v515 = vld [vmem:[%s513 + $0x8] sm:$0xff]
    %516 = vmatpush.msra.mxu0 %v320
    %517 = vmatpush.msra.mxu0 %v318
    %518 = vmatpush.msra.mxu0 %v316
    %519 = vmatpush.msra.mxu0 %v314
    %520 = vmatpush.msra.mxu0 %v312
    %521 = vmatpush.msra.mxu0 %v310
    %522 = vmatpush.msra.mxu0 %v308
    %523 = vmatpush.msra.mxu0 %v306
    %524 = vmatpush.msra.mxu0 %v304
    %525 = vmatpush.msra.mxu0 %v302
    %526 = vmatpush.msra.mxu0 %v300
    %527 = vmatpush.msra.mxu0 %v298
    %528 = vmatpush.msra.mxu0 %v296
    %529 = vmatpush.msra.mxu0 %v294
    %530 = vmatpush.msra.mxu0 %v292
    %531 = vmatpush.msra.mxu0 %v290
    %532 = vmatmul.f32.gmra.mxu0 %v510
    %v533 = vpop.f32.mrf.mxu0
    %v534 = vadd.f32 0.0, %v533
    %535 = vdwg.mxu0
    %536 = vmatpush.msra.mxu0 %v321
    %537 = vmatpush.msra.mxu0 %v319
    %538 = vmatpush.msra.mxu0 %v317
    %539 = vmatpush.msra.mxu0 %v315
    %540 = vmatpush.msra.mxu0 %v313
    %541 = vmatpush.msra.mxu0 %v311
    %542 = vmatpush.msra.mxu0 %v309
    %543 = vmatpush.msra.mxu0 %v307
    %544 = vmatpush.msra.mxu0 %v305
    %545 = vmatpush.msra.mxu0 %v303
    %546 = vmatpush.msra.mxu0 %v301
    %547 = vmatpush.msra.mxu0 %v299
    %548 = vmatpush.msra.mxu0 %v297
    %549 = vmatpush.msra.mxu0 %v295
    %550 = vmatpush.msra.mxu0 %v293
    %551 = vmatpush.msra.mxu0 %v291
    %552 = vmatmul.f32.gmra.mxu0 %v510
    %v553 = vpop.f32.mrf.mxu0
    %v554 = vadd.f32 0.0, %v553
    %555 = vdwg.mxu0
    %v556 = vadd.f32 %v514, %v534
    %v557 = vadd.f32 %v515, %v554
    %v558 = vxor.u32 %v556, 2147483648
    %v559 = vmul.f32 %v558, 1.442695
    %v560 = vpow.pop %v559
    %v561 = vadd.f32 %v560, 1.0
    %v562 = vrcp.pop %v561
    %v563 = vmul.f32 %v561, %v562
    %v564 = vsub.f32 1.0, %v563
    %v565 = vmul.f32 %v562, %v564
    %v566 = vadd.f32 %v562, %v565
    %vm567 = vweird.f32 %v561
    %vm568 = vweird.f32 %v562
    %vm569 = vmor %vm567, %vm568
    %v570 = vsel %vm569, %v562, %v566
    %v571 = vand.u32 2147483647, %v561
    %vm572 = vcmp.eq.f32.partialorder %v571, 8.507059e+37
    %v573 = vand.u32 %v561, 2147483648
    %v574 = vor.u32 1.1754944e-38, %v573
    %v575 = vsel %vm572, %v574, %v570
    %v576 = vmul.f32 1.0, %v575
    %v577 = vmul.f32 %v557, 2.0
    %v578 = vsel %vm284, %v577, %v557
    %v579 = vxor.u32 %v578, 2147483648
    %v580 = vmul.f32 %v579, 1.442695
    %v581 = vpow.pop %v580
    %v582 = vadd.f32 %v581, 1.0
    %v583 = vrcp.pop %v582
    %v584 = vmul.f32 %v582, %v583
    %v585 = vsub.f32 1.0, %v584
    %v586 = vmul.f32 %v583, %v585
    %v587 = vadd.f32 %v583, %v586
    %vm588 = vweird.f32 %v582
    %vm589 = vweird.f32 %v583
    %vm590 = vmor %vm588, %vm589
    %v591 = vsel %vm590, %v583, %v587
    %v592 = vand.u32 2147483647, %v582
    %vm593 = vcmp.eq.f32.partialorder %v592, 8.507059e+37
    %v594 = vand.u32 %v582, 2147483648
    %v595 = vor.u32 1.1754944e-38, %v594
    %v596 = vsel %vm593, %v595, %v591
    %v597 = vmul.f32 1.0, %v596
    %v598 = vmul.f32 %v597, 2.0
    %v599 = vsub.f32 %v598, 1.0
    %v600 = vsel %vm284, %v599, %v597
    %v601 = vsel %vm284, %v599, %v508
    %v602 = vmul.f32 %v576, %v601
    %603 = vrot.lane.b32.xlu0 %v602, 64
    %v604 = vpop.permute.xlu0 %603
    %v605 = vadd.f32 %v602, %v604
    %v606 = vtanh.pop %v605
    %v607 = vmul.f32 %v600, %v606
    %s608 = smul.u32 3, 2
    %s609 = smul.addr %s608, 8
    %s610 = scalar_lea.vmem [#allocation2], %s609
    %v611 = vld [vmem:[%s610] sm:$0xff]
    %v612 = vld [vmem:[%s610 + $0x8] sm:$0xff]
    %613 = vmatpush.msra.mxu0 %v320
    %614 = vmatpush.msra.mxu0 %v318
    %615 = vmatpush.msra.mxu0 %v316
    %616 = vmatpush.msra.mxu0 %v314
    %617 = vmatpush.msra.mxu0 %v312
    %618 = vmatpush.msra.mxu0 %v310
    %619 = vmatpush.msra.mxu0 %v308
    %620 = vmatpush.msra.mxu0 %v306
    %621 = vmatpush.msra.mxu0 %v304
    %622 = vmatpush.msra.mxu0 %v302
    %623 = vmatpush.msra.mxu0 %v300
    %624 = vmatpush.msra.mxu0 %v298
    %625 = vmatpush.msra.mxu0 %v296
    %626 = vmatpush.msra.mxu0 %v294
    %627 = vmatpush.msra.mxu0 %v292
    %628 = vmatpush.msra.mxu0 %v290
    %629 = vmatmul.f32.gmra.mxu0 %v607
    %v630 = vpop.f32.mrf.mxu0
    %v631 = vadd.f32 0.0, %v630
    %632 = vdwg.mxu0
    %633 = vmatpush.msra.mxu0 %v321
    %634 = vmatpush.msra.mxu0 %v319
    %635 = vmatpush.msra.mxu0 %v317
    %636 = vmatpush.msra.mxu0 %v315
    %637 = vmatpush.msra.mxu0 %v313
    %638 = vmatpush.msra.mxu0 %v311
    %639 = vmatpush.msra.mxu0 %v309
    %640 = vmatpush.msra.mxu0 %v307
    %641 = vmatpush.msra.mxu0 %v305
    %642 = vmatpush.msra.mxu0 %v303
    %643 = vmatpush.msra.mxu0 %v301
    %644 = vmatpush.msra.mxu0 %v299
    %645 = vmatpush.msra.mxu0 %v297
    %646 = vmatpush.msra.mxu0 %v295
    %647 = vmatpush.msra.mxu0 %v293
    %648 = vmatpush.msra.mxu0 %v291
    %649 = vmatmul.f32.gmra.mxu0 %v607
    %v650 = vpop.f32.mrf.mxu0
    %v651 = vadd.f32 0.0, %v650
    %652 = vdwg.mxu0
    %v653 = vadd.f32 %v611, %v631
    %v654 = vadd.f32 %v612, %v651
    %v655 = vxor.u32 %v653, 2147483648
    %v656 = vmul.f32 %v655, 1.442695
    %v657 = vpow.pop %v656
    %v658 = vadd.f32 %v657, 1.0
    %v659 = vrcp.pop %v658
    %v660 = vmul.f32 %v658, %v659
    %v661 = vsub.f32 1.0, %v660
    %v662 = vmul.f32 %v659, %v661
    %v663 = vadd.f32 %v659, %v662
    %vm664 = vweird.f32 %v658
    %vm665 = vweird.f32 %v659
    %vm666 = vmor %vm664, %vm665
    %v667 = vsel %vm666, %v659, %v663
    %v668 = vand.u32 2147483647, %v658
    %vm669 = vcmp.eq.f32.partialorder %v668, 8.507059e+37
    %v670 = vand.u32 %v658, 2147483648
    %v671 = vor.u32 1.1754944e-38, %v670
    %v672 = vsel %vm669, %v671, %v667
    %v673 = vmul.f32 1.0, %v672
    %v674 = vmul.f32 %v654, 2.0
    %v675 = vsel %vm284, %v674, %v654
    %v676 = vxor.u32 %v675, 2147483648
    %v677 = vmul.f32 %v676, 1.442695
    %v678 = vpow.pop %v677
    %v679 = vadd.f32 %v678, 1.0
    %v680 = vrcp.pop %v679
    %v681 = vmul.f32 %v679, %v680
    %v682 = vsub.f32 1.0, %v681
    %v683 = vmul.f32 %v680, %v682
    %v684 = vadd.f32 %v680, %v683
    %vm685 = vweird.f32 %v679
    %vm686 = vweird.f32 %v680
    %vm687 = vmor %vm685, %vm686
    %v688 = vsel %vm687, %v680, %v684
    %v689 = vand.u32 2147483647, %v679
    %vm690 = vcmp.eq.f32.partialorder %v689, 8.507059e+37
    %v691 = vand.u32 %v679, 2147483648
    %v692 = vor.u32 1.1754944e-38, %v691
    %v693 = vsel %vm690, %v692, %v688
    %v694 = vmul.f32 1.0, %v693
    %v695 = vmul.f32 %v694, 2.0
    %v696 = vsub.f32 %v695, 1.0
    %v697 = vsel %vm284, %v696, %v694
    %v698 = vsel %vm284, %v696, %v605
    %v699 = vmul.f32 %v673, %v698
    %700 = vrot.lane.b32.xlu0 %v699, 64
    %v701 = vpop.permute.xlu0 %700
    %v702 = vadd.f32 %v699, %v701
    %v703 = vtanh.pop %v702
    %v704 = vmul.f32 %v697, %v703
    %s705 = smul.u32 4, 2
    %s706 = smul.addr %s705, 8
    %s707 = scalar_lea.vmem [#allocation2], %s706
    %v708 = vld [vmem:[%s707] sm:$0xff]
    %v709 = vld [vmem:[%s707 + $0x8] sm:$0xff]
    %710 = vmatpush.msra.mxu0 %v320
    %711 = vmatpush.msra.mxu0 %v318
    %712 = vmatpush.msra.mxu0 %v316
    %713 = vmatpush.msra.mxu0 %v314
    %714 = vmatpush.msra.mxu0 %v312
    %715 = vmatpush.msra.mxu0 %v310
    %716 = vmatpush.msra.mxu0 %v308
    %717 = vmatpush.msra.mxu0 %v306
    %718 = vmatpush.msra.mxu0 %v304
    %719 = vmatpush.msra.mxu0 %v302
    %720 = vmatpush.msra.mxu0 %v300
    %721 = vmatpush.msra.mxu0 %v298
    %722 = vmatpush.msra.mxu0 %v296
    %723 = vmatpush.msra.mxu0 %v294
    %724 = vmatpush.msra.mxu0 %v292
    %725 = vmatpush.msra.mxu0 %v290
    %726 = vmatmul.f32.gmra.mxu0 %v704
    %v727 = vpop.f32.mrf.mxu0
    %v728 = vadd.f32 0.0, %v727
    %729 = vdwg.mxu0
    %730 = vmatpush.msra.mxu0 %v321
    %731 = vmatpush.msra.mxu0 %v319
    %732 = vmatpush.msra.mxu0 %v317
    %733 = vmatpush.msra.mxu0 %v315
    %734 = vmatpush.msra.mxu0 %v313
    %735 = vmatpush.msra.mxu0 %v311
    %736 = vmatpush.msra.mxu0 %v309
    %737 = vmatpush.msra.mxu0 %v307
    %738 = vmatpush.msra.mxu0 %v305
    %739 = vmatpush.msra.mxu0 %v303
    %740 = vmatpush.msra.mxu0 %v301
    %741 = vmatpush.msra.mxu0 %v299
    %742 = vmatpush.msra.mxu0 %v297
    %743 = vmatpush.msra.mxu0 %v295
    %744 = vmatpush.msra.mxu0 %v293
    %745 = vmatpush.msra.mxu0 %v291
    %746 = vmatmul.f32.gmra.mxu0 %v704
    %v747 = vpop.f32.mrf.mxu0
    %v748 = vadd.f32 0.0, %v747
    %749 = vdwg.mxu0
    %v750 = vadd.f32 %v708, %v728
    %v751 = vadd.f32 %v709, %v748
    %v752 = vxor.u32 %v750, 2147483648
    %v753 = vmul.f32 %v752, 1.442695
    %v754 = vpow.pop %v753
    %v755 = vadd.f32 %v754, 1.0
    %v756 = vrcp.pop %v755
    %v757 = vmul.f32 %v755, %v756
    %v758 = vsub.f32 1.0, %v757
    %v759 = vmul.f32 %v756, %v758
    %v760 = vadd.f32 %v756, %v759
    %vm761 = vweird.f32 %v755
    %vm762 = vweird.f32 %v756
    %vm763 = vmor %vm761, %vm762
    %v764 = vsel %vm763, %v756, %v760
    %v765 = vand.u32 2147483647, %v755
    %vm766 = vcmp.eq.f32.partialorder %v765, 8.507059e+37
    %v767 = vand.u32 %v755, 2147483648
    %v768 = vor.u32 1.1754944e-38, %v767
    %v769 = vsel %vm766, %v768, %v764
    %v770 = vmul.f32 1.0, %v769
    %v771 = vmul.f32 %v751, 2.0
    %v772 = vsel %vm284, %v771, %v751
    %v773 = vxor.u32 %v772, 2147483648
    %v774 = vmul.f32 %v773, 1.442695
    %v775 = vpow.pop %v774
    %v776 = vadd.f32 %v775, 1.0
    %v777 = vrcp.pop %v776
    %v778 = vmul.f32 %v776, %v777
    %v779 = vsub.f32 1.0, %v778
    %v780 = vmul.f32 %v777, %v779
    %v781 = vadd.f32 %v777, %v780
    %vm782 = vweird.f32 %v776
    %vm783 = vweird.f32 %v777
    %vm784 = vmor %vm782, %vm783
    %v785 = vsel %vm784, %v777, %v781
    %v786 = vand.u32 2147483647, %v776
    %vm787 = vcmp.eq.f32.partialorder %v786, 8.507059e+37
    %v788 = vand.u32 %v776, 2147483648
    %v789 = vor.u32 1.1754944e-38, %v788
    %v790 = vsel %vm787, %v789, %v785
    %v791 = vmul.f32 1.0, %v790
    %v792 = vmul.f32 %v791, 2.0
    %v793 = vsub.f32 %v792, 1.0
    %v794 = vsel %vm284, %v793, %v791
    %v795 = vsel %vm284, %v793, %v702
    %v796 = vmul.f32 %v770, %v795
    %797 = vrot.lane.b32.xlu0 %v796, 64
    %v798 = vpop.permute.xlu0 %797
    %v799 = vadd.f32 %v796, %v798
    %v800 = vtanh.pop %v799
    %v801 = vmul.f32 %v794, %v800
    %s802 = smul.u32 5, 2
    %s803 = smul.addr %s802, 8
    %s804 = scalar_lea.vmem [#allocation2], %s803
    %v805 = vld [vmem:[%s804] sm:$0xff]
    %v806 = vld [vmem:[%s804 + $0x8] sm:$0xff]
    %807 = vmatpush.msra.mxu0 %v320
    %808 = vmatpush.msra.mxu0 %v318
    %809 = vmatpush.msra.mxu0 %v316
    %810 = vmatpush.msra.mxu0 %v314
    %811 = vmatpush.msra.mxu0 %v312
    %812 = vmatpush.msra.mxu0 %v310
    %813 = vmatpush.msra.mxu0 %v308
    %814 = vmatpush.msra.mxu0 %v306
    %815 = vmatpush.msra.mxu0 %v304
    %816 = vmatpush.msra.mxu0 %v302
    %817 = vmatpush.msra.mxu0 %v300
    %818 = vmatpush.msra.mxu0 %v298
    %819 = vmatpush.msra.mxu0 %v296
    %820 = vmatpush.msra.mxu0 %v294
    %821 = vmatpush.msra.mxu0 %v292
    %822 = vmatpush.msra.mxu0 %v290
    %823 = vmatmul.f32.gmra.mxu0 %v801
    %v824 = vpop.f32.mrf.mxu0
    %v825 = vadd.f32 0.0, %v824
    %826 = vdwg.mxu0
    %827 = vmatpush.msra.mxu0 %v321
    %828 = vmatpush.msra.mxu0 %v319
    %829 = vmatpush.msra.mxu0 %v317
    %830 = vmatpush.msra.mxu0 %v315
    %831 = vmatpush.msra.mxu0 %v313
    %832 = vmatpush.msra.mxu0 %v311
    %833 = vmatpush.msra.mxu0 %v309
    %834 = vmatpush.msra.mxu0 %v307
    %835 = vmatpush.msra.mxu0 %v305
    %836 = vmatpush.msra.mxu0 %v303
    %837 = vmatpush.msra.mxu0 %v301
    %838 = vmatpush.msra.mxu0 %v299
    %839 = vmatpush.msra.mxu0 %v297
    %840 = vmatpush.msra.mxu0 %v295
    %841 = vmatpush.msra.mxu0 %v293
    %842 = vmatpush.msra.mxu0 %v291
    %843 = vmatmul.f32.gmra.mxu0 %v801
    %v844 = vpop.f32.mrf.mxu0
    %v845 = vadd.f32 0.0, %v844
    %846 = vdwg.mxu0
    %v847 = vadd.f32 %v805, %v825
    %v848 = vadd.f32 %v806, %v845
    %v849 = vxor.u32 %v847, 2147483648
    %v850 = vmul.f32 %v849, 1.442695
    %v851 = vpow.pop %v850
    %v852 = vadd.f32 %v851, 1.0
    %v853 = vrcp.pop %v852
    %v854 = vmul.f32 %v852, %v853
    %v855 = vsub.f32 1.0, %v854
    %v856 = vmul.f32 %v853, %v855
    %v857 = vadd.f32 %v853, %v856
    %vm858 = vweird.f32 %v852
    %vm859 = vweird.f32 %v853
    %vm860 = vmor %vm858, %vm859
    %v861 = vsel %vm860, %v853, %v857
    %v862 = vand.u32 2147483647, %v852
    %vm863 = vcmp.eq.f32.partialorder %v862, 8.507059e+37
    %v864 = vand.u32 %v852, 2147483648
    %v865 = vor.u32 1.1754944e-38, %v864
    %v866 = vsel %vm863, %v865, %v861
    %v867 = vmul.f32 1.0, %v866
    %v868 = vmul.f32 %v848, 2.0
    %v869 = vsel %vm284, %v868, %v848
    %v870 = vxor.u32 %v869, 2147483648
    %v871 = vmul.f32 %v870, 1.442695
    %v872 = vpow.pop %v871
    %v873 = vadd.f32 %v872, 1.0
    %v874 = vrcp.pop %v873
    %v875 = vmul.f32 %v873, %v874
    %v876 = vsub.f32 1.0, %v875
    %v877 = vmul.f32 %v874, %v876
    %v878 = vadd.f32 %v874, %v877
    %vm879 = vweird.f32 %v873
    %vm880 = vweird.f32 %v874
    %vm881 = vmor %vm879, %vm880
    %v882 = vsel %vm881, %v874, %v878
    %v883 = vand.u32 2147483647, %v873
    %vm884 = vcmp.eq.f32.partialorder %v883, 8.507059e+37
    %v885 = vand.u32 %v873, 2147483648
    %v886 = vor.u32 1.1754944e-38, %v885
    %v887 = vsel %vm884, %v886, %v882
    %v888 = vmul.f32 1.0, %v887
    %v889 = vmul.f32 %v888, 2.0
    %v890 = vsub.f32 %v889, 1.0
    %v891 = vsel %vm284, %v890, %v888
    %v892 = vsel %vm284, %v890, %v799
    %v893 = vmul.f32 %v867, %v892
    %894 = vrot.lane.b32.xlu0 %v893, 64
    %v895 = vpop.permute.xlu0 %894
    %v896 = vadd.f32 %v893, %v895
    %v897 = vtanh.pop %v896
    %v898 = vmul.f32 %v891, %v897
    %s899 = smul.u32 6, 2
    %s900 = smul.addr %s899, 8
    %s901 = scalar_lea.vmem [#allocation2], %s900
    %v902 = vld [vmem:[%s901] sm:$0xff]
    %v903 = vld [vmem:[%s901 + $0x8] sm:$0xff]
    %904 = vmatpush.msra.mxu0 %v320
    %905 = vmatpush.msra.mxu0 %v318
    %906 = vmatpush.msra.mxu0 %v316
    %907 = vmatpush.msra.mxu0 %v314
    %908 = vmatpush.msra.mxu0 %v312
    %909 = vmatpush.msra.mxu0 %v310
    %910 = vmatpush.msra.mxu0 %v308
    %911 = vmatpush.msra.mxu0 %v306
    %912 = vmatpush.msra.mxu0 %v304
    %913 = vmatpush.msra.mxu0 %v302
    %914 = vmatpush.msra.mxu0 %v300
    %915 = vmatpush.msra.mxu0 %v298
    %916 = vmatpush.msra.mxu0 %v296
    %917 = vmatpush.msra.mxu0 %v294
    %918 = vmatpush.msra.mxu0 %v292
    %919 = vmatpush.msra.mxu0 %v290
    %920 = vmatmul.f32.gmra.mxu0 %v898
    %v921 = vpop.f32.mrf.mxu0
    %v922 = vadd.f32 0.0, %v921
    %923 = vdwg.mxu0
    %924 = vmatpush.msra.mxu0 %v321
    %925 = vmatpush.msra.mxu0 %v319
    %926 = vmatpush.msra.mxu0 %v317
    %927 = vmatpush.msra.mxu0 %v315
    %928 = vmatpush.msra.mxu0 %v313
    %929 = vmatpush.msra.mxu0 %v311
    %930 = vmatpush.msra.mxu0 %v309
    %931 = vmatpush.msra.mxu0 %v307
    %932 = vmatpush.msra.mxu0 %v305
    %933 = vmatpush.msra.mxu0 %v303
    %934 = vmatpush.msra.mxu0 %v301
    %935 = vmatpush.msra.mxu0 %v299
    %936 = vmatpush.msra.mxu0 %v297
    %937 = vmatpush.msra.mxu0 %v295
    %938 = vmatpush.msra.mxu0 %v293
    %939 = vmatpush.msra.mxu0 %v291
    %940 = vmatmul.f32.gmra.mxu0 %v898
    %v941 = vpop.f32.mrf.mxu0
    %v942 = vadd.f32 0.0, %v941
    %943 = vdwg.mxu0
    %v944 = vadd.f32 %v902, %v922
    %v945 = vadd.f32 %v903, %v942
    %v946 = vxor.u32 %v944, 2147483648
    %v947 = vmul.f32 %v946, 1.442695
    %v948 = vpow.pop %v947
    %v949 = vadd.f32 %v948, 1.0
    %v950 = vrcp.pop %v949
    %v951 = vmul.f32 %v949, %v950
    %v952 = vsub.f32 1.0, %v951
    %v953 = vmul.f32 %v950, %v952
    %v954 = vadd.f32 %v950, %v953
    %vm955 = vweird.f32 %v949
    %vm956 = vweird.f32 %v950
    %vm957 = vmor %vm955, %vm956
    %v958 = vsel %vm957, %v950, %v954
    %v959 = vand.u32 2147483647, %v949
    %vm960 = vcmp.eq.f32.partialorder %v959, 8.507059e+37
    %v961 = vand.u32 %v949, 2147483648
    %v962 = vor.u32 1.1754944e-38, %v961
    %v963 = vsel %vm960, %v962, %v958
    %v964 = vmul.f32 1.0, %v963
    %v965 = vmul.f32 %v945, 2.0
    %v966 = vsel %vm284, %v965, %v945
    %v967 = vxor.u32 %v966, 2147483648
    %v968 = vmul.f32 %v967, 1.442695
    %v969 = vpow.pop %v968
    %v970 = vadd.f32 %v969, 1.0
    %v971 = vrcp.pop %v970
    %v972 = vmul.f32 %v970, %v971
    %v973 = vsub.f32 1.0, %v972
    %v974 = vmul.f32 %v971, %v973
    %v975 = vadd.f32 %v971, %v974
    %vm976 = vweird.f32 %v970
    %vm977 = vweird.f32 %v971
    %vm978 = vmor %vm976, %vm977
    %v979 = vsel %vm978, %v971, %v975
    %v980 = vand.u32 2147483647, %v970
    %vm981 = vcmp.eq.f32.partialorder %v980, 8.507059e+37
    %v982 = vand.u32 %v970, 2147483648
    %v983 = vor.u32 1.1754944e-38, %v982
    %v984 = vsel %vm981, %v983, %v979
    %v985 = vmul.f32 1.0, %v984
    %v986 = vmul.f32 %v985, 2.0
    %v987 = vsub.f32 %v986, 1.0
    %v988 = vsel %vm284, %v987, %v985
    %v989 = vsel %vm284, %v987, %v896
    %v990 = vmul.f32 %v964, %v989
    %991 = vrot.lane.b32.xlu0 %v990, 64
    %v992 = vpop.permute.xlu0 %991
    %v993 = vadd.f32 %v990, %v992
    %v994 = vtanh.pop %v993
    %v995 = vmul.f32 %v988, %v994
    %s996 = smul.u32 7, 2
    %s997 = smul.addr %s996, 8
    %s998 = scalar_lea.vmem [#allocation2], %s997
    %v999 = vld [vmem:[%s998] sm:$0xff]
    %v1000 = vld [vmem:[%s998 + $0x8] sm:$0xff]
    %1001 = vmatpush.msra.mxu0 %v320
    %1002 = vmatpush.msra.mxu0 %v318
    %1003 = vmatpush.msra.mxu0 %v316
    %1004 = vmatpush.msra.mxu0 %v314
    %1005 = vmatpush.msra.mxu0 %v312
    %1006 = vmatpush.msra.mxu0 %v310
    %1007 = vmatpush.msra.mxu0 %v308
    %1008 = vmatpush.msra.mxu0 %v306
    %1009 = vmatpush.msra.mxu0 %v304
    %1010 = vmatpush.msra.mxu0 %v302
    %1011 = vmatpush.msra.mxu0 %v300
    %1012 = vmatpush.msra.mxu0 %v298
    %1013 = vmatpush.msra.mxu0 %v296
    %1014 = vmatpush.msra.mxu0 %v294
    %1015 = vmatpush.msra.mxu0 %v292
    %1016 = vmatpush.msra.mxu0 %v290
    %1017 = vmatmul.f32.gmra.mxu0 %v995
    %v1018 = vpop.f32.mrf.mxu0
    %v1019 = vadd.f32 0.0, %v1018
    %1020 = vdwg.mxu0
    %1021 = vmatpush.msra.mxu0 %v321
    %1022 = vmatpush.msra.mxu0 %v319
    %1023 = vmatpush.msra.mxu0 %v317
    %1024 = vmatpush.msra.mxu0 %v315
    %1025 = vmatpush.msra.mxu0 %v313
    %1026 = vmatpush.msra.mxu0 %v311
    %1027 = vmatpush.msra.mxu0 %v309
    %1028 = vmatpush.msra.mxu0 %v307
    %1029 = vmatpush.msra.mxu0 %v305
    %1030 = vmatpush.msra.mxu0 %v303
    %1031 = vmatpush.msra.mxu0 %v301
    %1032 = vmatpush.msra.mxu0 %v299
    %1033 = vmatpush.msra.mxu0 %v297
    %1034 = vmatpush.msra.mxu0 %v295
    %1035 = vmatpush.msra.mxu0 %v293
    %1036 = vmatpush.msra.mxu0 %v291
    %1037 = vmatmul.f32.gmra.mxu0 %v995
    %v1038 = vpop.f32.mrf.mxu0
    %v1039 = vadd.f32 0.0, %v1038
    %1040 = vdwg.mxu0
    %v1041 = vadd.f32 %v999, %v1019
    %v1042 = vadd.f32 %v1000, %v1039
    %v1043 = vxor.u32 %v1041, 2147483648
    %v1044 = vmul.f32 %v1043, 1.442695
    %v1045 = vpow.pop %v1044
    %v1046 = vadd.f32 %v1045, 1.0
    %v1047 = vrcp.pop %v1046
    %v1048 = vmul.f32 %v1046, %v1047
    %v1049 = vsub.f32 1.0, %v1048
    %v1050 = vmul.f32 %v1047, %v1049
    %v1051 = vadd.f32 %v1047, %v1050
    %vm1052 = vweird.f32 %v1046
    %vm1053 = vweird.f32 %v1047
    %vm1054 = vmor %vm1052, %vm1053
    %v1055 = vsel %vm1054, %v1047, %v1051
    %v1056 = vand.u32 2147483647, %v1046
    %vm1057 = vcmp.eq.f32.partialorder %v1056, 8.507059e+37
    %v1058 = vand.u32 %v1046, 2147483648
    %v1059 = vor.u32 1.1754944e-38, %v1058
    %v1060 = vsel %vm1057, %v1059, %v1055
    %v1061 = vmul.f32 1.0, %v1060
    %v1062 = vmul.f32 %v1042, 2.0
    %v1063 = vsel %vm284, %v1062, %v1042
    %v1064 = vxor.u32 %v1063, 2147483648
    %v1065 = vmul.f32 %v1064, 1.442695
    %v1066 = vpow.pop %v1065
    %v1067 = vadd.f32 %v1066, 1.0
    %v1068 = vrcp.pop %v1067
    %v1069 = vmul.f32 %v1067, %v1068
    %v1070 = vsub.f32 1.0, %v1069
    %v1071 = vmul.f32 %v1068, %v1070
    %v1072 = vadd.f32 %v1068, %v1071
    %vm1073 = vweird.f32 %v1067
    %vm1074 = vweird.f32 %v1068
    %vm1075 = vmor %vm1073, %vm1074
    %v1076 = vsel %vm1075, %v1068, %v1072
    %v1077 = vand.u32 2147483647, %v1067
    %vm1078 = vcmp.eq.f32.partialorder %v1077, 8.507059e+37
    %v1079 = vand.u32 %v1067, 2147483648
    %v1080 = vor.u32 1.1754944e-38, %v1079
    %v1081 = vsel %vm1078, %v1080, %v1076
    %v1082 = vmul.f32 1.0, %v1081
    %v1083 = vmul.f32 %v1082, 2.0
    %v1084 = vsub.f32 %v1083, 1.0
    %v1085 = vsel %vm284, %v1084, %v1082
    %v1086 = vsel %vm284, %v1084, %v993
    %v1087 = vmul.f32 %v1061, %v1086
    %1088 = vrot.lane.b32.xlu0 %v1087, 64
    %v1089 = vpop.permute.xlu0 %1088
    %v1090 = vadd.f32 %v1087, %v1089
    %v1091 = vtanh.pop %v1090
    %v1092 = vmul.f32 %v1085, %v1091
    %s1093 = smul.u32 8, 2
    %s1094 = smul.addr %s1093, 8
    %s1095 = scalar_lea.vmem [#allocation2], %s1094
    %v1096 = vld [vmem:[%s1095] sm:$0xff]
    %v1097 = vld [vmem:[%s1095 + $0x8] sm:$0xff]
    %1098 = vmatpush.msra.mxu0 %v320
    %1099 = vmatpush.msra.mxu0 %v318
    %1100 = vmatpush.msra.mxu0 %v316
    %1101 = vmatpush.msra.mxu0 %v314
    %1102 = vmatpush.msra.mxu0 %v312
    %1103 = vmatpush.msra.mxu0 %v310
    %1104 = vmatpush.msra.mxu0 %v308
    %1105 = vmatpush.msra.mxu0 %v306
    %1106 = vmatpush.msra.mxu0 %v304
    %1107 = vmatpush.msra.mxu0 %v302
    %1108 = vmatpush.msra.mxu0 %v300
    %1109 = vmatpush.msra.mxu0 %v298
    %1110 = vmatpush.msra.mxu0 %v296
    %1111 = vmatpush.msra.mxu0 %v294
    %1112 = vmatpush.msra.mxu0 %v292
    %1113 = vmatpush.msra.mxu0 %v290
    %1114 = vmatmul.f32.gmra.mxu0 %v1092
    %v1115 = vpop.f32.mrf.mxu0
    %v1116 = vadd.f32 0.0, %v1115
    %1117 = vdwg.mxu0
    %1118 = vmatpush.msra.mxu0 %v321
    %1119 = vmatpush.msra.mxu0 %v319
    %1120 = vmatpush.msra.mxu0 %v317
    %1121 = vmatpush.msra.mxu0 %v315
    %1122 = vmatpush.msra.mxu0 %v313
    %1123 = vmatpush.msra.mxu0 %v311
    %1124 = vmatpush.msra.mxu0 %v309
    %1125 = vmatpush.msra.mxu0 %v307
    %1126 = vmatpush.msra.mxu0 %v305
    %1127 = vmatpush.msra.mxu0 %v303
    %1128 = vmatpush.msra.mxu0 %v301
    %1129 = vmatpush.msra.mxu0 %v299
    %1130 = vmatpush.msra.mxu0 %v297
    %1131 = vmatpush.msra.mxu0 %v295
    %1132 = vmatpush.msra.mxu0 %v293
    %1133 = vmatpush.msra.mxu0 %v291
    %1134 = vmatmul.f32.gmra.mxu0 %v1092
    %v1135 = vpop.f32.mrf.mxu0
    %v1136 = vadd.f32 0.0, %v1135
    %1137 = vdwg.mxu0
    %v1138 = vadd.f32 %v1096, %v1116
    %v1139 = vadd.f32 %v1097, %v1136
    %v1140 = vxor.u32 %v1138, 2147483648
    %v1141 = vmul.f32 %v1140, 1.442695
    %v1142 = vpow.pop %v1141
    %v1143 = vadd.f32 %v1142, 1.0
    %v1144 = vrcp.pop %v1143
    %v1145 = vmul.f32 %v1143, %v1144
    %v1146 = vsub.f32 1.0, %v1145
    %v1147 = vmul.f32 %v1144, %v1146
    %v1148 = vadd.f32 %v1144, %v1147
    %vm1149 = vweird.f32 %v1143
    %vm1150 = vweird.f32 %v1144
    %vm1151 = vmor %vm1149, %vm1150
    %v1152 = vsel %vm1151, %v1144, %v1148
    %v1153 = vand.u32 2147483647, %v1143
    %vm1154 = vcmp.eq.f32.partialorder %v1153, 8.507059e+37
    %v1155 = vand.u32 %v1143, 2147483648
    %v1156 = vor.u32 1.1754944e-38, %v1155
    %v1157 = vsel %vm1154, %v1156, %v1152
    %v1158 = vmul.f32 1.0, %v1157
    %v1159 = vmul.f32 %v1139, 2.0
    %v1160 = vsel %vm284, %v1159, %v1139
    %v1161 = vxor.u32 %v1160, 2147483648
    %v1162 = vmul.f32 %v1161, 1.442695
    %v1163 = vpow.pop %v1162
    %v1164 = vadd.f32 %v1163, 1.0
    %v1165 = vrcp.pop %v1164
    %v1166 = vmul.f32 %v1164, %v1165
    %v1167 = vsub.f32 1.0, %v1166
    %v1168 = vmul.f32 %v1165, %v1167
    %v1169 = vadd.f32 %v1165, %v1168
    %vm1170 = vweird.f32 %v1164
    %vm1171 = vweird.f32 %v1165
    %vm1172 = vmor %vm1170, %vm1171
    %v1173 = vsel %vm1172, %v1165, %v1169
    %v1174 = vand.u32 2147483647, %v1164
    %vm1175 = vcmp.eq.f32.partialorder %v1174, 8.507059e+37
    %v1176 = vand.u32 %v1164, 2147483648
    %v1177 = vor.u32 1.1754944e-38, %v1176
    %v1178 = vsel %vm1175, %v1177, %v1173
    %v1179 = vmul.f32 1.0, %v1178
    %v1180 = vmul.f32 %v1179, 2.0
    %v1181 = vsub.f32 %v1180, 1.0
    %v1182 = vsel %vm284, %v1181, %v1179
    %v1183 = vsel %vm284, %v1181, %v1090
    %v1184 = vmul.f32 %v1158, %v1183
    %1185 = vrot.lane.b32.xlu0 %v1184, 64
    %v1186 = vpop.permute.xlu0 %1185
    %v1187 = vadd.f32 %v1184, %v1186
    %v1188 = vtanh.pop %v1187
    %v1189 = vmul.f32 %v1182, %v1188
    %s1190 = smul.u32 9, 2
    %s1191 = smul.addr %s1190, 8
    %s1192 = scalar_lea.vmem [#allocation2], %s1191
    %v1193 = vld [vmem:[%s1192] sm:$0xff]
    %v1194 = vld [vmem:[%s1192 + $0x8] sm:$0xff]
    %1195 = vmatpush.msra.mxu0 %v320
    %1196 = vmatpush.msra.mxu0 %v318
    %1197 = vmatpush.msra.mxu0 %v316
    %1198 = vmatpush.msra.mxu0 %v314
    %1199 = vmatpush.msra.mxu0 %v312
    %1200 = vmatpush.msra.mxu0 %v310
    %1201 = vmatpush.msra.mxu0 %v308
    %1202 = vmatpush.msra.mxu0 %v306
    %1203 = vmatpush.msra.mxu0 %v304
    %1204 = vmatpush.msra.mxu0 %v302
    %1205 = vmatpush.msra.mxu0 %v300
    %1206 = vmatpush.msra.mxu0 %v298
    %1207 = vmatpush.msra.mxu0 %v296
    %1208 = vmatpush.msra.mxu0 %v294
    %1209 = vmatpush.msra.mxu0 %v292
    %1210 = vmatpush.msra.mxu0 %v290
    %1211 = vmatmul.f32.gmra.mxu0 %v1189
    %v1212 = vpop.f32.mrf.mxu0
    %v1213 = vadd.f32 0.0, %v1212
    %1214 = vdwg.mxu0
    %1215 = vmatpush.msra.mxu0 %v321
    %1216 = vmatpush.msra.mxu0 %v319
    %1217 = vmatpush.msra.mxu0 %v317
    %1218 = vmatpush.msra.mxu0 %v315
    %1219 = vmatpush.msra.mxu0 %v313
    %1220 = vmatpush.msra.mxu0 %v311
    %1221 = vmatpush.msra.mxu0 %v309
    %1222 = vmatpush.msra.mxu0 %v307
    %1223 = vmatpush.msra.mxu0 %v305
    %1224 = vmatpush.msra.mxu0 %v303
    %1225 = vmatpush.msra.mxu0 %v301
    %1226 = vmatpush.msra.mxu0 %v299
    %1227 = vmatpush.msra.mxu0 %v297
    %1228 = vmatpush.msra.mxu0 %v295
    %1229 = vmatpush.msra.mxu0 %v293
    %1230 = vmatpush.msra.mxu0 %v291
    %1231 = vmatmul.f32.gmra.mxu0 %v1189
    %v1232 = vpop.f32.mrf.mxu0
    %v1233 = vadd.f32 0.0, %v1232
    %1234 = vdwg.mxu0
    %v1235 = vadd.f32 %v1193, %v1213
    %v1236 = vadd.f32 %v1194, %v1233
    %v1237 = vxor.u32 %v1235, 2147483648
    %v1238 = vmul.f32 %v1237, 1.442695
    %v1239 = vpow.pop %v1238
    %v1240 = vadd.f32 %v1239, 1.0
    %v1241 = vrcp.pop %v1240
    %v1242 = vmul.f32 %v1240, %v1241
    %v1243 = vsub.f32 1.0, %v1242
    %v1244 = vmul.f32 %v1241, %v1243
    %v1245 = vadd.f32 %v1241, %v1244
    %vm1246 = vweird.f32 %v1240
    %vm1247 = vweird.f32 %v1241
    %vm1248 = vmor %vm1246, %vm1247
    %v1249 = vsel %vm1248, %v1241, %v1245
    %v1250 = vand.u32 2147483647, %v1240
    %vm1251 = vcmp.eq.f32.partialorder %v1250, 8.507059e+37
    %v1252 = vand.u32 %v1240, 2147483648
    %v1253 = vor.u32 1.1754944e-38, %v1252
    %v1254 = vsel %vm1251, %v1253, %v1249
    %v1255 = vmul.f32 1.0, %v1254
    %v1256 = vmul.f32 %v1236, 2.0
    %v1257 = vsel %vm284, %v1256, %v1236
    %v1258 = vxor.u32 %v1257, 2147483648
    %v1259 = vmul.f32 %v1258, 1.442695
    %v1260 = vpow.pop %v1259
    %v1261 = vadd.f32 %v1260, 1.0
    %v1262 = vrcp.pop %v1261
    %v1263 = vmul.f32 %v1261, %v1262
    %v1264 = vsub.f32 1.0, %v1263
    %v1265 = vmul.f32 %v1262, %v1264
    %v1266 = vadd.f32 %v1262, %v1265
    %vm1267 = vweird.f32 %v1261
    %vm1268 = vweird.f32 %v1262
    %vm1269 = vmor %vm1267, %vm1268
    %v1270 = vsel %vm1269, %v1262, %v1266
    %v1271 = vand.u32 2147483647, %v1261
    %vm1272 = vcmp.eq.f32.partialorder %v1271, 8.507059e+37
    %v1273 = vand.u32 %v1261, 2147483648
    %v1274 = vor.u32 1.1754944e-38, %v1273
    %v1275 = vsel %vm1272, %v1274, %v1270
    %v1276 = vmul.f32 1.0, %v1275
    %v1277 = vmul.f32 %v1276, 2.0
    %v1278 = vsub.f32 %v1277, 1.0
    %v1279 = vsel %vm284, %v1278, %v1276
    %v1280 = vsel %vm284, %v1278, %v1187
    %v1281 = vmul.f32 %v1255, %v1280
    %1282 = vrot.lane.b32.xlu0 %v1281, 64
    %v1283 = vpop.permute.xlu0 %1282
    %v1284 = vadd.f32 %v1281, %v1283
    %v1285 = vtanh.pop %v1284
    %v1286 = vmul.f32 %v1279, %v1285
    %s1287 = smul.u32 10, 2
    %s1288 = smul.addr %s1287, 8
    %s1289 = scalar_lea.vmem [#allocation2], %s1288
    %v1290 = vld [vmem:[%s1289] sm:$0xff]
    %v1291 = vld [vmem:[%s1289 + $0x8] sm:$0xff]
    %1292 = vmatpush.msra.mxu0 %v320
    %1293 = vmatpush.msra.mxu0 %v318
    %1294 = vmatpush.msra.mxu0 %v316
    %1295 = vmatpush.msra.mxu0 %v314
    %1296 = vmatpush.msra.mxu0 %v312
    %1297 = vmatpush.msra.mxu0 %v310
    %1298 = vmatpush.msra.mxu0 %v308
    %1299 = vmatpush.msra.mxu0 %v306
    %1300 = vmatpush.msra.mxu0 %v304
    %1301 = vmatpush.msra.mxu0 %v302
    %1302 = vmatpush.msra.mxu0 %v300
    %1303 = vmatpush.msra.mxu0 %v298
    %1304 = vmatpush.msra.mxu0 %v296
    %1305 = vmatpush.msra.mxu0 %v294
    %1306 = vmatpush.msra.mxu0 %v292
    %1307 = vmatpush.msra.mxu0 %v290
    %1308 = vmatmul.f32.gmra.mxu0 %v1286
    %v1309 = vpop.f32.mrf.mxu0
    %v1310 = vadd.f32 0.0, %v1309
    %1311 = vdwg.mxu0
    %1312 = vmatpush.msra.mxu0 %v321
    %1313 = vmatpush.msra.mxu0 %v319
    %1314 = vmatpush.msra.mxu0 %v317
    %1315 = vmatpush.msra.mxu0 %v315
    %1316 = vmatpush.msra.mxu0 %v313
    %1317 = vmatpush.msra.mxu0 %v311
    %1318 = vmatpush.msra.mxu0 %v309
    %1319 = vmatpush.msra.mxu0 %v307
    %1320 = vmatpush.msra.mxu0 %v305
    %1321 = vmatpush.msra.mxu0 %v303
    %1322 = vmatpush.msra.mxu0 %v301
    %1323 = vmatpush.msra.mxu0 %v299
    %1324 = vmatpush.msra.mxu0 %v297
    %1325 = vmatpush.msra.mxu0 %v295
    %1326 = vmatpush.msra.mxu0 %v293
    %1327 = vmatpush.msra.mxu0 %v291
    %1328 = vmatmul.f32.gmra.mxu0 %v1286
    %v1329 = vpop.f32.mrf.mxu0
    %v1330 = vadd.f32 0.0, %v1329
    %1331 = vdwg.mxu0
    %v1332 = vadd.f32 %v1290, %v1310
    %v1333 = vadd.f32 %v1291, %v1330
    %v1334 = vxor.u32 %v1332, 2147483648
    %v1335 = vmul.f32 %v1334, 1.442695
    %v1336 = vpow.pop %v1335
    %v1337 = vadd.f32 %v1336, 1.0
    %v1338 = vrcp.pop %v1337
    %v1339 = vmul.f32 %v1337, %v1338
    %v1340 = vsub.f32 1.0, %v1339
    %v1341 = vmul.f32 %v1338, %v1340
    %v1342 = vadd.f32 %v1338, %v1341
    %vm1343 = vweird.f32 %v1337
    %vm1344 = vweird.f32 %v1338
    %vm1345 = vmor %vm1343, %vm1344
    %v1346 = vsel %vm1345, %v1338, %v1342
    %v1347 = vand.u32 2147483647, %v1337
    %vm1348 = vcmp.eq.f32.partialorder %v1347, 8.507059e+37
    %v1349 = vand.u32 %v1337, 2147483648
    %v1350 = vor.u32 1.1754944e-38, %v1349
    %v1351 = vsel %vm1348, %v1350, %v1346
    %v1352 = vmul.f32 1.0, %v1351
    %v1353 = vmul.f32 %v1333, 2.0
    %v1354 = vsel %vm284, %v1353, %v1333
    %v1355 = vxor.u32 %v1354, 2147483648
    %v1356 = vmul.f32 %v1355, 1.442695
    %v1357 = vpow.pop %v1356
    %v1358 = vadd.f32 %v1357, 1.0
    %v1359 = vrcp.pop %v1358
    %v1360 = vmul.f32 %v1358, %v1359
    %v1361 = vsub.f32 1.0, %v1360
    %v1362 = vmul.f32 %v1359, %v1361
    %v1363 = vadd.f32 %v1359, %v1362
    %vm1364 = vweird.f32 %v1358
    %vm1365 = vweird.f32 %v1359
    %vm1366 = vmor %vm1364, %vm1365
    %v1367 = vsel %vm1366, %v1359, %v1363
    %v1368 = vand.u32 2147483647, %v1358
    %vm1369 = vcmp.eq.f32.partialorder %v1368, 8.507059e+37
    %v1370 = vand.u32 %v1358, 2147483648
    %v1371 = vor.u32 1.1754944e-38, %v1370
    %v1372 = vsel %vm1369, %v1371, %v1367
    %v1373 = vmul.f32 1.0, %v1372
    %v1374 = vmul.f32 %v1373, 2.0
    %v1375 = vsub.f32 %v1374, 1.0
    %v1376 = vsel %vm284, %v1375, %v1373
    %v1377 = vsel %vm284, %v1375, %v1284
    %v1378 = vmul.f32 %v1352, %v1377
    %1379 = vrot.lane.b32.xlu0 %v1378, 64
    %v1380 = vpop.permute.xlu0 %1379
    %v1381 = vadd.f32 %v1378, %v1380
    %v1382 = vtanh.pop %v1381
    %v1383 = vmul.f32 %v1376, %v1382
    %s1384 = smul.u32 11, 2
    %s1385 = smul.addr %s1384, 8
    %s1386 = scalar_lea.vmem [#allocation2], %s1385
    %v1387 = vld [vmem:[%s1386] sm:$0xff]
    %v1388 = vld [vmem:[%s1386 + $0x8] sm:$0xff]
    %1389 = vmatpush.msra.mxu0 %v320
    %1390 = vmatpush.msra.mxu0 %v318
    %1391 = vmatpush.msra.mxu0 %v316
    %1392 = vmatpush.msra.mxu0 %v314
    %1393 = vmatpush.msra.mxu0 %v312
    %1394 = vmatpush.msra.mxu0 %v310
    %1395 = vmatpush.msra.mxu0 %v308
    %1396 = vmatpush.msra.mxu0 %v306
    %1397 = vmatpush.msra.mxu0 %v304
    %1398 = vmatpush.msra.mxu0 %v302
    %1399 = vmatpush.msra.mxu0 %v300
    %1400 = vmatpush.msra.mxu0 %v298
    %1401 = vmatpush.msra.mxu0 %v296
    %1402 = vmatpush.msra.mxu0 %v294
    %1403 = vmatpush.msra.mxu0 %v292
    %1404 = vmatpush.msra.mxu0 %v290
    %1405 = vmatmul.f32.gmra.mxu0 %v1383
    %v1406 = vpop.f32.mrf.mxu0
    %v1407 = vadd.f32 0.0, %v1406
    %1408 = vdwg.mxu0
    %1409 = vmatpush.msra.mxu0 %v321
    %1410 = vmatpush.msra.mxu0 %v319
    %1411 = vmatpush.msra.mxu0 %v317
    %1412 = vmatpush.msra.mxu0 %v315
    %1413 = vmatpush.msra.mxu0 %v313
    %1414 = vmatpush.msra.mxu0 %v311
    %1415 = vmatpush.msra.mxu0 %v309
    %1416 = vmatpush.msra.mxu0 %v307
    %1417 = vmatpush.msra.mxu0 %v305
    %1418 = vmatpush.msra.mxu0 %v303
    %1419 = vmatpush.msra.mxu0 %v301
    %1420 = vmatpush.msra.mxu0 %v299
    %1421 = vmatpush.msra.mxu0 %v297
    %1422 = vmatpush.msra.mxu0 %v295
    %1423 = vmatpush.msra.mxu0 %v293
    %1424 = vmatpush.msra.mxu0 %v291
    %1425 = vmatmul.f32.gmra.mxu0 %v1383
    %v1426 = vpop.f32.mrf.mxu0
    %v1427 = vadd.f32 0.0, %v1426
    %1428 = vdwg.mxu0
    %v1429 = vadd.f32 %v1387, %v1407
    %v1430 = vadd.f32 %v1388, %v1427
    %v1431 = vxor.u32 %v1429, 2147483648
    %v1432 = vmul.f32 %v1431, 1.442695
    %v1433 = vpow.pop %v1432
    %v1434 = vadd.f32 %v1433, 1.0
    %v1435 = vrcp.pop %v1434
    %v1436 = vmul.f32 %v1434, %v1435
    %v1437 = vsub.f32 1.0, %v1436
    %v1438 = vmul.f32 %v1435, %v1437
    %v1439 = vadd.f32 %v1435, %v1438
    %vm1440 = vweird.f32 %v1434
    %vm1441 = vweird.f32 %v1435
    %vm1442 = vmor %vm1440, %vm1441
    %v1443 = vsel %vm1442, %v1435, %v1439
    %v1444 = vand.u32 2147483647, %v1434
    %vm1445 = vcmp.eq.f32.partialorder %v1444, 8.507059e+37
    %v1446 = vand.u32 %v1434, 2147483648
    %v1447 = vor.u32 1.1754944e-38, %v1446
    %v1448 = vsel %vm1445, %v1447, %v1443
    %v1449 = vmul.f32 1.0, %v1448
    %v1450 = vmul.f32 %v1430, 2.0
    %v1451 = vsel %vm284, %v1450, %v1430
    %v1452 = vxor.u32 %v1451, 2147483648
    %v1453 = vmul.f32 %v1452, 1.442695
    %v1454 = vpow.pop %v1453
    %v1455 = vadd.f32 %v1454, 1.0
    %v1456 = vrcp.pop %v1455
    %v1457 = vmul.f32 %v1455, %v1456
    %v1458 = vsub.f32 1.0, %v1457
    %v1459 = vmul.f32 %v1456, %v1458
    %v1460 = vadd.f32 %v1456, %v1459
    %vm1461 = vweird.f32 %v1455
    %vm1462 = vweird.f32 %v1456
    %vm1463 = vmor %vm1461, %vm1462
    %v1464 = vsel %vm1463, %v1456, %v1460
    %v1465 = vand.u32 2147483647, %v1455
    %vm1466 = vcmp.eq.f32.partialorder %v1465, 8.507059e+37
    %v1467 = vand.u32 %v1455, 2147483648
    %v1468 = vor.u32 1.1754944e-38, %v1467
    %v1469 = vsel %vm1466, %v1468, %v1464
    %v1470 = vmul.f32 1.0, %v1469
    %v1471 = vmul.f32 %v1470, 2.0
    %v1472 = vsub.f32 %v1471, 1.0
    %v1473 = vsel %vm284, %v1472, %v1470
    %v1474 = vsel %vm284, %v1472, %v1381
    %v1475 = vmul.f32 %v1449, %v1474
    %1476 = vrot.lane.b32.xlu0 %v1475, 64
    %v1477 = vpop.permute.xlu0 %1476
    %v1478 = vadd.f32 %v1475, %v1477
    %v1479 = vtanh.pop %v1478
    %v1480 = vmul.f32 %v1473, %v1479
    %s1481 = smul.u32 12, 2
    %s1482 = smul.addr %s1481, 8
    %s1483 = scalar_lea.vmem [#allocation2], %s1482
    %v1484 = vld [vmem:[%s1483] sm:$0xff]
    %v1485 = vld [vmem:[%s1483 + $0x8] sm:$0xff]
    %1486 = vmatpush.msra.mxu0 %v320
    %1487 = vmatpush.msra.mxu0 %v318
    %1488 = vmatpush.msra.mxu0 %v316
    %1489 = vmatpush.msra.mxu0 %v314
    %1490 = vmatpush.msra.mxu0 %v312
    %1491 = vmatpush.msra.mxu0 %v310
    %1492 = vmatpush.msra.mxu0 %v308
    %1493 = vmatpush.msra.mxu0 %v306
    %1494 = vmatpush.msra.mxu0 %v304
    %1495 = vmatpush.msra.mxu0 %v302
    %1496 = vmatpush.msra.mxu0 %v300
    %1497 = vmatpush.msra.mxu0 %v298
    %1498 = vmatpush.msra.mxu0 %v296
    %1499 = vmatpush.msra.mxu0 %v294
    %1500 = vmatpush.msra.mxu0 %v292
    %1501 = vmatpush.msra.mxu0 %v290
    %1502 = vmatmul.f32.gmra.mxu0 %v1480
    %v1503 = vpop.f32.mrf.mxu0
    %v1504 = vadd.f32 0.0, %v1503
    %1505 = vdwg.mxu0
    %1506 = vmatpush.msra.mxu0 %v321
    %1507 = vmatpush.msra.mxu0 %v319
    %1508 = vmatpush.msra.mxu0 %v317
    %1509 = vmatpush.msra.mxu0 %v315
    %1510 = vmatpush.msra.mxu0 %v313
    %1511 = vmatpush.msra.mxu0 %v311
    %1512 = vmatpush.msra.mxu0 %v309
    %1513 = vmatpush.msra.mxu0 %v307
    %1514 = vmatpush.msra.mxu0 %v305
    %1515 = vmatpush.msra.mxu0 %v303
    %1516 = vmatpush.msra.mxu0 %v301
    %1517 = vmatpush.msra.mxu0 %v299
    %1518 = vmatpush.msra.mxu0 %v297
    %1519 = vmatpush.msra.mxu0 %v295
    %1520 = vmatpush.msra.mxu0 %v293
    %1521 = vmatpush.msra.mxu0 %v291
    %1522 = vmatmul.f32.gmra.mxu0 %v1480
    %v1523 = vpop.f32.mrf.mxu0
    %v1524 = vadd.f32 0.0, %v1523
    %1525 = vdwg.mxu0
    %v1526 = vadd.f32 %v1484, %v1504
    %v1527 = vadd.f32 %v1485, %v1524
    %v1528 = vxor.u32 %v1526, 2147483648
    %v1529 = vmul.f32 %v1528, 1.442695
    %v1530 = vpow.pop %v1529
    %v1531 = vadd.f32 %v1530, 1.0
    %v1532 = vrcp.pop %v1531
    %v1533 = vmul.f32 %v1531, %v1532
    %v1534 = vsub.f32 1.0, %v1533
    %v1535 = vmul.f32 %v1532, %v1534
    %v1536 = vadd.f32 %v1532, %v1535
    %vm1537 = vweird.f32 %v1531
    %vm1538 = vweird.f32 %v1532
    %vm1539 = vmor %vm1537, %vm1538
    %v1540 = vsel %vm1539, %v1532, %v1536
    %v1541 = vand.u32 2147483647, %v1531
    %vm1542 = vcmp.eq.f32.partialorder %v1541, 8.507059e+37
    %v1543 = vand.u32 %v1531, 2147483648
    %v1544 = vor.u32 1.1754944e-38, %v1543
    %v1545 = vsel %vm1542, %v1544, %v1540
    %v1546 = vmul.f32 1.0, %v1545
    %v1547 = vmul.f32 %v1527, 2.0
    %v1548 = vsel %vm284, %v1547, %v1527
    %v1549 = vxor.u32 %v1548, 2147483648
    %v1550 = vmul.f32 %v1549, 1.442695
    %v1551 = vpow.pop %v1550
    %v1552 = vadd.f32 %v1551, 1.0
    %v1553 = vrcp.pop %v1552
    %v1554 = vmul.f32 %v1552, %v1553
    %v1555 = vsub.f32 1.0, %v1554
    %v1556 = vmul.f32 %v1553, %v1555
    %v1557 = vadd.f32 %v1553, %v1556
    %vm1558 = vweird.f32 %v1552
    %vm1559 = vweird.f32 %v1553
    %vm1560 = vmor %vm1558, %vm1559
    %v1561 = vsel %vm1560, %v1553, %v1557
    %v1562 = vand.u32 2147483647, %v1552
    %vm1563 = vcmp.eq.f32.partialorder %v1562, 8.507059e+37
    %v1564 = vand.u32 %v1552, 2147483648
    %v1565 = vor.u32 1.1754944e-38, %v1564
    %v1566 = vsel %vm1563, %v1565, %v1561
    %v1567 = vmul.f32 1.0, %v1566
    %v1568 = vmul.f32 %v1567, 2.0
    %v1569 = vsub.f32 %v1568, 1.0
    %v1570 = vsel %vm284, %v1569, %v1567
    %v1571 = vsel %vm284, %v1569, %v1478
    %v1572 = vmul.f32 %v1546, %v1571
    %1573 = vrot.lane.b32.xlu0 %v1572, 64
    %v1574 = vpop.permute.xlu0 %1573
    %v1575 = vadd.f32 %v1572, %v1574
    %v1576 = vtanh.pop %v1575
    %v1577 = vmul.f32 %v1570, %v1576
    %s1578 = smul.u32 13, 2
    %s1579 = smul.addr %s1578, 8
    %s1580 = scalar_lea.vmem [#allocation2], %s1579
    %v1581 = vld [vmem:[%s1580] sm:$0xff]
    %v1582 = vld [vmem:[%s1580 + $0x8] sm:$0xff]
    %1583 = vmatpush.msra.mxu0 %v320
    %1584 = vmatpush.msra.mxu0 %v318
    %1585 = vmatpush.msra.mxu0 %v316
    %1586 = vmatpush.msra.mxu0 %v314
    %1587 = vmatpush.msra.mxu0 %v312
    %1588 = vmatpush.msra.mxu0 %v310
    %1589 = vmatpush.msra.mxu0 %v308
    %1590 = vmatpush.msra.mxu0 %v306
    %1591 = vmatpush.msra.mxu0 %v304
    %1592 = vmatpush.msra.mxu0 %v302
    %1593 = vmatpush.msra.mxu0 %v300
    %1594 = vmatpush.msra.mxu0 %v298
    %1595 = vmatpush.msra.mxu0 %v296
    %1596 = vmatpush.msra.mxu0 %v294
    %1597 = vmatpush.msra.mxu0 %v292
    %1598 = vmatpush.msra.mxu0 %v290
    %1599 = vmatmul.f32.gmra.mxu0 %v1577
    %v1600 = vpop.f32.mrf.mxu0
    %v1601 = vadd.f32 0.0, %v1600
    %1602 = vdwg.mxu0
    %1603 = vmatpush.msra.mxu0 %v321
    %1604 = vmatpush.msra.mxu0 %v319
    %1605 = vmatpush.msra.mxu0 %v317
    %1606 = vmatpush.msra.mxu0 %v315
    %1607 = vmatpush.msra.mxu0 %v313
    %1608 = vmatpush.msra.mxu0 %v311
    %1609 = vmatpush.msra.mxu0 %v309
    %1610 = vmatpush.msra.mxu0 %v307
    %1611 = vmatpush.msra.mxu0 %v305
    %1612 = vmatpush.msra.mxu0 %v303
    %1613 = vmatpush.msra.mxu0 %v301
    %1614 = vmatpush.msra.mxu0 %v299
    %1615 = vmatpush.msra.mxu0 %v297
    %1616 = vmatpush.msra.mxu0 %v295
    %1617 = vmatpush.msra.mxu0 %v293
    %1618 = vmatpush.msra.mxu0 %v291
    %1619 = vmatmul.f32.gmra.mxu0 %v1577
    %v1620 = vpop.f32.mrf.mxu0
    %v1621 = vadd.f32 0.0, %v1620
    %1622 = vdwg.mxu0
    %v1623 = vadd.f32 %v1581, %v1601
    %v1624 = vadd.f32 %v1582, %v1621
    %v1625 = vxor.u32 %v1623, 2147483648
    %v1626 = vmul.f32 %v1625, 1.442695
    %v1627 = vpow.pop %v1626
    %v1628 = vadd.f32 %v1627, 1.0
    %v1629 = vrcp.pop %v1628
    %v1630 = vmul.f32 %v1628, %v1629
    %v1631 = vsub.f32 1.0, %v1630
    %v1632 = vmul.f32 %v1629, %v1631
    %v1633 = vadd.f32 %v1629, %v1632
    %vm1634 = vweird.f32 %v1628
    %vm1635 = vweird.f32 %v1629
    %vm1636 = vmor %vm1634, %vm1635
    %v1637 = vsel %vm1636, %v1629, %v1633
    %v1638 = vand.u32 2147483647, %v1628
    %vm1639 = vcmp.eq.f32.partialorder %v1638, 8.507059e+37
    %v1640 = vand.u32 %v1628, 2147483648
    %v1641 = vor.u32 1.1754944e-38, %v1640
    %v1642 = vsel %vm1639, %v1641, %v1637
    %v1643 = vmul.f32 1.0, %v1642
    %v1644 = vmul.f32 %v1624, 2.0
    %v1645 = vsel %vm284, %v1644, %v1624
    %v1646 = vxor.u32 %v1645, 2147483648
    %v1647 = vmul.f32 %v1646, 1.442695
    %v1648 = vpow.pop %v1647
    %v1649 = vadd.f32 %v1648, 1.0
    %v1650 = vrcp.pop %v1649
    %v1651 = vmul.f32 %v1649, %v1650
    %v1652 = vsub.f32 1.0, %v1651
    %v1653 = vmul.f32 %v1650, %v1652
    %v1654 = vadd.f32 %v1650, %v1653
    %vm1655 = vweird.f32 %v1649
    %vm1656 = vweird.f32 %v1650
    %vm1657 = vmor %vm1655, %vm1656
    %v1658 = vsel %vm1657, %v1650, %v1654
    %v1659 = vand.u32 2147483647, %v1649
    %vm1660 = vcmp.eq.f32.partialorder %v1659, 8.507059e+37
    %v1661 = vand.u32 %v1649, 2147483648
    %v1662 = vor.u32 1.1754944e-38, %v1661
    %v1663 = vsel %vm1660, %v1662, %v1658
    %v1664 = vmul.f32 1.0, %v1663
    %v1665 = vmul.f32 %v1664, 2.0
    %v1666 = vsub.f32 %v1665, 1.0
    %v1667 = vsel %vm284, %v1666, %v1664
    %v1668 = vsel %vm284, %v1666, %v1575
    %v1669 = vmul.f32 %v1643, %v1668
    %1670 = vrot.lane.b32.xlu0 %v1669, 64
    %v1671 = vpop.permute.xlu0 %1670
    %v1672 = vadd.f32 %v1669, %v1671
    %v1673 = vtanh.pop %v1672
    %v1674 = vmul.f32 %v1667, %v1673
    %s1675 = smul.u32 14, 2
    %s1676 = smul.addr %s1675, 8
    %s1677 = scalar_lea.vmem [#allocation2], %s1676
    %v1678 = vld [vmem:[%s1677] sm:$0xff]
    %v1679 = vld [vmem:[%s1677 + $0x8] sm:$0xff]
    %1680 = vmatpush.msra.mxu0 %v320
    %1681 = vmatpush.msra.mxu0 %v318
    %1682 = vmatpush.msra.mxu0 %v316
    %1683 = vmatpush.msra.mxu0 %v314
    %1684 = vmatpush.msra.mxu0 %v312
    %1685 = vmatpush.msra.mxu0 %v310
    %1686 = vmatpush.msra.mxu0 %v308
    %1687 = vmatpush.msra.mxu0 %v306
    %1688 = vmatpush.msra.mxu0 %v304
    %1689 = vmatpush.msra.mxu0 %v302
    %1690 = vmatpush.msra.mxu0 %v300
    %1691 = vmatpush.msra.mxu0 %v298
    %1692 = vmatpush.msra.mxu0 %v296
    %1693 = vmatpush.msra.mxu0 %v294
    %1694 = vmatpush.msra.mxu0 %v292
    %1695 = vmatpush.msra.mxu0 %v290
    %1696 = vmatmul.f32.gmra.mxu0 %v1674
    %v1697 = vpop.f32.mrf.mxu0
    %v1698 = vadd.f32 0.0, %v1697
    %1699 = vdwg.mxu0
    %1700 = vmatpush.msra.mxu0 %v321
    %1701 = vmatpush.msra.mxu0 %v319
    %1702 = vmatpush.msra.mxu0 %v317
    %1703 = vmatpush.msra.mxu0 %v315
    %1704 = vmatpush.msra.mxu0 %v313
    %1705 = vmatpush.msra.mxu0 %v311
    %1706 = vmatpush.msra.mxu0 %v309
    %1707 = vmatpush.msra.mxu0 %v307
    %1708 = vmatpush.msra.mxu0 %v305
    %1709 = vmatpush.msra.mxu0 %v303
    %1710 = vmatpush.msra.mxu0 %v301
    %1711 = vmatpush.msra.mxu0 %v299
    %1712 = vmatpush.msra.mxu0 %v297
    %1713 = vmatpush.msra.mxu0 %v295
    %1714 = vmatpush.msra.mxu0 %v293
    %1715 = vmatpush.msra.mxu0 %v291
    %1716 = vmatmul.f32.gmra.mxu0 %v1674
    %v1717 = vpop.f32.mrf.mxu0
    %v1718 = vadd.f32 0.0, %v1717
    %1719 = vdwg.mxu0
    %v1720 = vadd.f32 %v1678, %v1698
    %v1721 = vadd.f32 %v1679, %v1718
    %v1722 = vxor.u32 %v1720, 2147483648
    %v1723 = vmul.f32 %v1722, 1.442695
    %v1724 = vpow.pop %v1723
    %v1725 = vadd.f32 %v1724, 1.0
    %v1726 = vrcp.pop %v1725
    %v1727 = vmul.f32 %v1725, %v1726
    %v1728 = vsub.f32 1.0, %v1727
    %v1729 = vmul.f32 %v1726, %v1728
    %v1730 = vadd.f32 %v1726, %v1729
    %vm1731 = vweird.f32 %v1725
    %vm1732 = vweird.f32 %v1726
    %vm1733 = vmor %vm1731, %vm1732
    %v1734 = vsel %vm1733, %v1726, %v1730
    %v1735 = vand.u32 2147483647, %v1725
    %vm1736 = vcmp.eq.f32.partialorder %v1735, 8.507059e+37
    %v1737 = vand.u32 %v1725, 2147483648
    %v1738 = vor.u32 1.1754944e-38, %v1737
    %v1739 = vsel %vm1736, %v1738, %v1734
    %v1740 = vmul.f32 1.0, %v1739
    %v1741 = vmul.f32 %v1721, 2.0
    %v1742 = vsel %vm284, %v1741, %v1721
    %v1743 = vxor.u32 %v1742, 2147483648
    %v1744 = vmul.f32 %v1743, 1.442695
    %v1745 = vpow.pop %v1744
    %v1746 = vadd.f32 %v1745, 1.0
    %v1747 = vrcp.pop %v1746
    %v1748 = vmul.f32 %v1746, %v1747
    %v1749 = vsub.f32 1.0, %v1748
    %v1750 = vmul.f32 %v1747, %v1749
    %v1751 = vadd.f32 %v1747, %v1750
    %vm1752 = vweird.f32 %v1746
    %vm1753 = vweird.f32 %v1747
    %vm1754 = vmor %vm1752, %vm1753
    %v1755 = vsel %vm1754, %v1747, %v1751
    %v1756 = vand.u32 2147483647, %v1746
    %vm1757 = vcmp.eq.f32.partialorder %v1756, 8.507059e+37
    %v1758 = vand.u32 %v1746, 2147483648
    %v1759 = vor.u32 1.1754944e-38, %v1758
    %v1760 = vsel %vm1757, %v1759, %v1755
    %v1761 = vmul.f32 1.0, %v1760
    %v1762 = vmul.f32 %v1761, 2.0
    %v1763 = vsub.f32 %v1762, 1.0
    %v1764 = vsel %vm284, %v1763, %v1761
    %v1765 = vsel %vm284, %v1763, %v1672
    %v1766 = vmul.f32 %v1740, %v1765
    %1767 = vrot.lane.b32.xlu0 %v1766, 64
    %v1768 = vpop.permute.xlu0 %1767
    %v1769 = vadd.f32 %v1766, %v1768
    %v1770 = vtanh.pop %v1769
    %v1771 = vmul.f32 %v1764, %v1770
    %s1772 = smul.u32 15, 2
    %s1773 = smul.addr %s1772, 8
    %s1774 = scalar_lea.vmem [#allocation2], %s1773
    %v1775 = vld [vmem:[%s1774] sm:$0xff]
    %v1776 = vld [vmem:[%s1774 + $0x8] sm:$0xff]
    %1777 = vmatpush.msra.mxu0 %v320
    %1778 = vmatpush.msra.mxu0 %v318
    %1779 = vmatpush.msra.mxu0 %v316
    %1780 = vmatpush.msra.mxu0 %v314
    %1781 = vmatpush.msra.mxu0 %v312
    %1782 = vmatpush.msra.mxu0 %v310
    %1783 = vmatpush.msra.mxu0 %v308
    %1784 = vmatpush.msra.mxu0 %v306
    %1785 = vmatpush.msra.mxu0 %v304
    %1786 = vmatpush.msra.mxu0 %v302
    %1787 = vmatpush.msra.mxu0 %v300
    %1788 = vmatpush.msra.mxu0 %v298
    %1789 = vmatpush.msra.mxu0 %v296
    %1790 = vmatpush.msra.mxu0 %v294
    %1791 = vmatpush.msra.mxu0 %v292
    %1792 = vmatpush.msra.mxu0 %v290
    %1793 = vmatmul.f32.gmra.mxu0 %v1771
    %v1794 = vpop.f32.mrf.mxu0
    %v1795 = vadd.f32 0.0, %v1794
    %1796 = vdwg.mxu0
    %1797 = vmatpush.msra.mxu0 %v321
    %1798 = vmatpush.msra.mxu0 %v319
    %1799 = vmatpush.msra.mxu0 %v317
    %1800 = vmatpush.msra.mxu0 %v315
    %1801 = vmatpush.msra.mxu0 %v313
    %1802 = vmatpush.msra.mxu0 %v311
    %1803 = vmatpush.msra.mxu0 %v309
    %1804 = vmatpush.msra.mxu0 %v307
    %1805 = vmatpush.msra.mxu0 %v305
    %1806 = vmatpush.msra.mxu0 %v303
    %1807 = vmatpush.msra.mxu0 %v301
    %1808 = vmatpush.msra.mxu0 %v299
    %1809 = vmatpush.msra.mxu0 %v297
    %1810 = vmatpush.msra.mxu0 %v295
    %1811 = vmatpush.msra.mxu0 %v293
    %1812 = vmatpush.msra.mxu0 %v291
    %1813 = vmatmul.f32.gmra.mxu0 %v1771
    %v1814 = vpop.f32.mrf.mxu0
    %v1815 = vadd.f32 0.0, %v1814
    %1816 = vdwg.mxu0
    %v1817 = vadd.f32 %v1775, %v1795
    %v1818 = vadd.f32 %v1776, %v1815
    %v1819 = vxor.u32 %v1817, 2147483648
    %v1820 = vmul.f32 %v1819, 1.442695
    %v1821 = vpow.pop %v1820
    %v1822 = vadd.f32 %v1821, 1.0
    %v1823 = vrcp.pop %v1822
    %v1824 = vmul.f32 %v1822, %v1823
    %v1825 = vsub.f32 1.0, %v1824
    %v1826 = vmul.f32 %v1823, %v1825
    %v1827 = vadd.f32 %v1823, %v1826
    %vm1828 = vweird.f32 %v1822
    %vm1829 = vweird.f32 %v1823
    %vm1830 = vmor %vm1828, %vm1829
    %v1831 = vsel %vm1830, %v1823, %v1827
    %v1832 = vand.u32 2147483647, %v1822
    %vm1833 = vcmp.eq.f32.partialorder %v1832, 8.507059e+37
    %v1834 = vand.u32 %v1822, 2147483648
    %v1835 = vor.u32 1.1754944e-38, %v1834
    %v1836 = vsel %vm1833, %v1835, %v1831
    %v1837 = vmul.f32 1.0, %v1836
    %v1838 = vmul.f32 %v1818, 2.0
    %v1839 = vsel %vm284, %v1838, %v1818
    %v1840 = vxor.u32 %v1839, 2147483648
    %v1841 = vmul.f32 %v1840, 1.442695
    %v1842 = vpow.pop %v1841
    %v1843 = vadd.f32 %v1842, 1.0
    %v1844 = vrcp.pop %v1843
    %v1845 = vmul.f32 %v1843, %v1844
    %v1846 = vsub.f32 1.0, %v1845
    %v1847 = vmul.f32 %v1844, %v1846
    %v1848 = vadd.f32 %v1844, %v1847
    %vm1849 = vweird.f32 %v1843
    %vm1850 = vweird.f32 %v1844
    %vm1851 = vmor %vm1849, %vm1850
    %v1852 = vsel %vm1851, %v1844, %v1848
    %v1853 = vand.u32 2147483647, %v1843
    %vm1854 = vcmp.eq.f32.partialorder %v1853, 8.507059e+37
    %v1855 = vand.u32 %v1843, 2147483648
    %v1856 = vor.u32 1.1754944e-38, %v1855
    %v1857 = vsel %vm1854, %v1856, %v1852
    %v1858 = vmul.f32 1.0, %v1857
    %v1859 = vmul.f32 %v1858, 2.0
    %v1860 = vsub.f32 %v1859, 1.0
    %v1861 = vsel %vm284, %v1860, %v1858
    %v1862 = vsel %vm284, %v1860, %v1769
    %v1863 = vmul.f32 %v1837, %v1862
    %1864 = vrot.lane.b32.xlu0 %v1863, 64
    %v1865 = vpop.permute.xlu0 %1864
    %v1866 = vadd.f32 %v1863, %v1865
    %v1867 = vtanh.pop %v1866
    %v1868 = vmul.f32 %v1861, %v1867
    %v1869 = vld [vmem:[#allocation3] sm:$0xff]
    %v1870 = vld [vmem:[#allocation3 + $0x8] sm:$0xff]
    %v1871 = vld [vmem:[#allocation3 + $0x10] sm:$0xff]
    %v1872 = vld [vmem:[#allocation3 + $0x18] sm:$0xff]
    %v1873 = vld [vmem:[#allocation3 + $0x20] sm:$0xff]
    %v1874 = vld [vmem:[#allocation3 + $0x28] sm:$0xff]
    %v1875 = vld [vmem:[#allocation3 + $0x30] sm:$0xff]
    %v1876 = vld [vmem:[#allocation3 + $0x38] sm:$0xff]
    %v1877 = vld [vmem:[#allocation3 + $0x40] sm:$0xff]
    %v1878 = vld [vmem:[#allocation3 + $0x48] sm:$0xff]
    %v1879 = vld [vmem:[#allocation3 + $0x50] sm:$0xff]
    %v1880 = vld [vmem:[#allocation3 + $0x58] sm:$0xff]
    %v1881 = vld [vmem:[#allocation3 + $0x60] sm:$0xff]
    %v1882 = vld [vmem:[#allocation3 + $0x68] sm:$0xff]
    %v1883 = vld [vmem:[#allocation3 + $0x70] sm:$0xff]
    %v1884 = vld [vmem:[#allocation3 + $0x78] sm:$0xff]
    %v1885 = vld [vmem:[%s5] sm:$0x1]
    %v1887 = vperm.slane %v1885, 0
    %1889 = vmatpush.msra.mxu0 %v1884
    %1890 = vmatpush.msra.mxu0 %v1883
    %1891 = vmatpush.msra.mxu0 %v1882
    %1892 = vmatpush.msra.mxu0 %v1881
    %1893 = vmatpush.msra.mxu0 %v1880
    %1894 = vmatpush.msra.mxu0 %v1879
    %1895 = vmatpush.msra.mxu0 %v1878
    %1896 = vmatpush.msra.mxu0 %v1877
    %1897 = vmatpush.msra.mxu0 %v1876
    %1898 = vmatpush.msra.mxu0 %v1875
    %1899 = vmatpush.msra.mxu0 %v1874
    %1900 = vmatpush.msra.mxu0 %v1873
    %1901 = vmatpush.msra.mxu0 %v1872
    %1902 = vmatpush.msra.mxu0 %v1871
    %1903 = vmatpush.msra.mxu0 %v1870
    %1904 = vmatpush.msra.mxu0 %v1869
    %1905 = vmatmul.f32.gmra.mxu0 %v1868
    %v1906 = vpop.f32.mrf.mxu0
    %v1907 = vadd.f32 %v1887, %v1906
    %1908 = vdwg.mxu0
    %1909 = vst [vmem:[%s6] sm:$0xff] %v1907
    // Predicated region
    $region30: #{cnn_lstm_forward.1} parent=1 // pred_check
      _
    $region31: #{cnn_lstm_forward.1} parent=1 // pred_check_branch
      %1911 = sbr.rel (0) target = $region33
    $region32: #{cnn_lstm_forward.1} parent=1 // pred_region
      _
    $region33: #{cnn_lstm_forward.1} parent=1 // pred_fallthru
      _
    // Predicated region
    $region34: #{cnn_lstm_forward.1} parent=1 // pred_check
      _
    $region35: #{cnn_lstm_forward.1} parent=1 // pred_check_branch
      %1913 = sbr.rel (0) target = $region37
    $region36: #{cnn_lstm_forward.1} parent=1 // pred_region
      _
    $region37: #{cnn_lstm_forward.1} parent=1 // pred_fallthru
      _
    %1914 = vsyncpa [#allocation4], 1

</llo_original>
